<compile_context>
chip_gen: v5e
topology: v5e:2x2
jax: 0.10.0
libtpu: 0.0.40
codegen_flags: <defaults>
</compile_context>

<pallas_src>
import jax
import jax.numpy as jnp
from jax.experimental import pallas as pl
from jax.experimental.pallas import tpu as pltpu

NEG_SLOPE = 0.01  # torch.nn.LeakyReLU default negative_slope


def nonlinear_typebin_kernel(inp_ref, w1_ref, b1_ref, w2w_ref, b2w_ref,
                             idx_ref, lane_ref, g_ref, out_ref):
    # --- hidden Linear (MXU) + LeakyReLU (VPU) ------------------------------
    h = jnp.dot(inp_ref[...], w1_ref[...],
                preferred_element_type=jnp.float32) + b1_ref[...]   # (tb, nc)
    h = jnp.where(h > 0, h, NEG_SLOPE * h)

    # --- out Linear, widened to K*D columns (MXU) ---------------------------
    # o_wide[:, k*D + d] == o[:, d]   (w2w/b2w are wrapper-side tilings of w2/b2)
    o_wide = jnp.dot(h, w2w_ref[...],
                     preferred_element_type=jnp.float32) + b2w_ref[...]  # (tb, K*D)

    # --- gather(dim=1) as mask (VPU) + block-diagonal matmul (MXU) ----------
    # idx_ref[b, k*D+d] = type_[b, k] ; lane_ref[0, k*D+d] = d
    mask = idx_ref[...] == lane_ref[...]                              # (tb, K*D)
    masked = jnp.where(mask, o_wide, 0.0)
    # g_ref[k*D+d, k'] = (k == k')  =>  out[b, k] = o[b, type_[b, k]]
    out_ref[...] = jnp.dot(masked, g_ref[...],
                           preferred_element_type=jnp.float32).astype(out_ref.dtype)


def _num_tensorcores():
    """Best-effort count of TensorCores sharing the grid (v7x megacore = 2)."""
    try:
        dev = jax.devices()[0]
        n = getattr(dev, "num_cores", None)
        if n:
            return int(n)
        if "v7" in str(getattr(dev, "device_kind", "")).lower():
            return 2
    except Exception:
        pass
    return 1


def _pick_batch_tile(B):
    n_tc = _num_tensorcores()
    if n_tc >= 2 and B >= 16:
        # exactly 2 balanced "parallel" steps (rounded up to 8 sublanes)
        tb = ((-(-B // 2)) + 7) // 8 * 8
    else:
        # single grid step on single-TC chips: step overhead dominates here
        tb = B
    tb = min(tb, B)
    # VMEM safety cap for very large batches (keeps idx tile + o_wide small)
    if tb > 2048:
        tb = 2048
    return tb


def nonlinear_typebin(inp, type_, w1, b1, w2, b2, *, tb=None):
    """inp:(B,in_nc) f32, type_:(B,K) i32, w1:(in_nc,nc), b1:(1,nc),
    w2:(nc,D), b2:(1,D)  ->  (B,K) f32, with D = out_nc*num_bins."""
    B, in_nc = inp.shape
    nc = w1.shape[1]
    D = w2.shape[1]
    K = type_.shape[1]
    KD = K * D

    if tb is None:
        tb = _pick_batch_tile(B)
    tb = min(tb, B)
    if tb < B:
        assert tb % 8 == 0, "batch tile must be a multiple of 8 (sublanes)"
    grid = (pl.cdiv(B, tb),)

    # ---- wrapper-side constant restructuring (layout plumbing, not compute) --
    w2_wide = jnp.tile(w2, (1, K))                               # (nc, K*D)
    b2_wide = jnp.tile(b2.reshape(1, D), (1, K))                 # (1,  K*D)
    idx_rep = jnp.repeat(type_.astype(jnp.int32), D, axis=1)     # (B,  K*D)
    lane_d = jnp.tile(jnp.arange(D, dtype=jnp.int32), (K,)).reshape(1, KD)
    gmat = jnp.repeat(jnp.eye(K, dtype=jnp.float32), D, axis=0)  # (K*D, K)

    flops = 2 * B * (in_nc * nc + nc * KD + KD * K) + 2 * B * KD
    bytes_accessed = 4 * (B * in_nc + in_nc * nc + nc
                          + nc * KD + KD              # w2_wide, b2_wide
                          + B * KD + KD + KD * K      # idx_rep, lane_d, gmat
                          + B * K)                    # output

    return pl.pallas_call(
        nonlinear_typebin_kernel,
        out_shape=jax.ShapeDtypeStruct((B, K), jnp.float32),
        grid_spec=pl.GridSpec(
            grid=grid,
            in_specs=[
                pl.BlockSpec((tb, in_nc), lambda i: (i, 0)),   # inp tile
                pl.BlockSpec((in_nc, nc), lambda i: (0, 0)),   # w1 (constant)
                pl.BlockSpec((1, nc),     lambda i: (0, 0)),   # b1
                pl.BlockSpec((nc, KD),    lambda i: (0, 0)),   # w2_wide (constant)
                pl.BlockSpec((1, KD),     lambda i: (0, 0)),   # b2_wide
                pl.BlockSpec((tb, KD),    lambda i: (i, 0)),   # repeated indices tile
                pl.BlockSpec((1, KD),     lambda i: (0, 0)),   # per-lane target d
                pl.BlockSpec((KD, K),     lambda i: (0, 0)),   # block-diag ones
            ],
            out_specs=pl.BlockSpec((tb, K), lambda i: (i, 0)),
        ),
        compiler_params=pltpu.CompilerParams(
            dimension_semantics=("parallel",),
        ),
        cost_estimate=pl.CostEstimate(
            flops=flops, transcendentals=0, bytes_accessed=bytes_accessed),
    )(inp, w1, b1, w2_wide, b2_wide, idx_rep, lane_d, gmat)


if __name__ == "__main__":
    # Small shapes consistent with the module structure (in_nc features ->
    # nc hidden -> out_nc*num_bins logits, gather num_bins indices per row),
    # with enough batch rows for a balanced 2-step parallel grid.
    B, in_nc, nc, out_nc, num_bins = 512, 4, 128, 4, 8
    D = out_nc * num_bins          # 32
    K = num_bins                   # indices gathered per row

    key = jax.random.PRNGKey(0)
    k_inp, k_w1, k_b1, k_w2, k_b2, k_type = jax.random.split(key, 6)

    inp = jax.random.normal(k_inp, (B, in_nc), dtype=jnp.float32)
    # Deterministic synthetic parameter init (not a checkpoint load).
    w1 = jax.random.normal(k_w1, (in_nc, nc), dtype=jnp.float32) * 0.1
    b1 = jax.random.normal(k_b1, (1, nc), dtype=jnp.float32) * 0.01
    w2 = jax.random.normal(k_w2, (nc, D), dtype=jnp.float32) * 0.05
    b2 = jax.random.normal(k_b2, (1, D), dtype=jnp.float32) * 0.01

    # Fully generic gather indices (like torch.gather with arbitrary type_).
    type_ = jax.random.randint(k_type, (B, K), 0, D, dtype=jnp.int32)

    out = nonlinear_typebin(inp, type_, w1, b1, w2, b2)
    out = jax.block_until_ready(out)

    # Pure-JAX reference (high-precision matmuls so the check is meaningful).
    h_ref = jnp.dot(inp, w1, precision=jax.lax.Precision.HIGHEST) + b1
    h_ref = jnp.where(h_ref > 0, h_ref, NEG_SLOPE * h_ref)
    o_ref = jnp.dot(h_ref, w2, precision=jax.lax.Precision.HIGHEST) + b2
    ref = jnp.take_along_axis(o_ref, type_, axis=1)

    assert out.shape == (B, K)
    assert jnp.allclose(out, ref, rtol=1e-4, atol=1e-4), "mismatch vs reference"
    print("KERNEL_OK")
</pallas_src>

<mosaic_0001>
module attributes {stable_mosaic.version = 11 : i64} {
  func.func @nonlinear_typebin_kernel(%arg0: i32, %arg1: memref<512x4xf32, #tpu.memory_space<vmem>>, %arg2: memref<4x128xf32, #tpu.memory_space<vmem>>, %arg3: memref<1x128xf32, #tpu.memory_space<vmem>>, %arg4: memref<128x256xf32, #tpu.memory_space<vmem>>, %arg5: memref<1x256xf32, #tpu.memory_space<vmem>>, %arg6: memref<512x256xi32, #tpu.memory_space<vmem>>, %arg7: memref<1x256xi32, #tpu.memory_space<vmem>>, %arg8: memref<256x8xf32, #tpu.memory_space<vmem>>, %arg9: memref<512x8xf32, #tpu.memory_space<vmem>>) attributes {dimension_semantics = [#tpu.dimension_semantics<parallel>], iteration_bounds = array<i64: 1>, scalar_prefetch = 0 : i64, scratch_operands = 0 : i64, tpu.core_type = #tpu.core_type<tc>, window_params = [{transform_indices = @transform_0, window_bounds = array<i64: 512, 4>}, {pipeline_mode = #tpu.pipeline_mode<synchronous>, transform_indices = @transform_1, window_bounds = array<i64: 4, 128>}, {pipeline_mode = #tpu.pipeline_mode<synchronous>, transform_indices = @transform_2, window_bounds = array<i64: 1, 128>}, {pipeline_mode = #tpu.pipeline_mode<synchronous>, transform_indices = @transform_3, window_bounds = array<i64: 128, 256>}, {pipeline_mode = #tpu.pipeline_mode<synchronous>, transform_indices = @transform_4, window_bounds = array<i64: 1, 256>}, {transform_indices = @transform_5, window_bounds = array<i64: 512, 256>}, {pipeline_mode = #tpu.pipeline_mode<synchronous>, transform_indices = @transform_6, window_bounds = array<i64: 1, 256>}, {pipeline_mode = #tpu.pipeline_mode<synchronous>, transform_indices = @transform_7, window_bounds = array<i64: 256, 8>}, {transform_indices = @transform_8, window_bounds = array<i64: 512, 8>}]} {
    %c0 = arith.constant 0 : index
    %c0_0 = arith.constant 0 : index
    %0 = vector.load %arg1[%c0, %c0_0] : memref<512x4xf32, #tpu.memory_space<vmem>>, vector<512x4xf32>
    %c0_1 = arith.constant 0 : index
    %c0_2 = arith.constant 0 : index
    %1 = vector.load %arg2[%c0_1, %c0_2] : memref<4x128xf32, #tpu.memory_space<vmem>>, vector<4x128xf32>
    %cst = arith.constant dense<0.000000e+00> : vector<512x128xf32>
    %2 = tpu.matmul %0, %1, %cst {dimension_numbers = #tpu.dot_dimension_numbers<[1], [0], [0], [1], [0, 0, 1, 1], [], []>} : vector<512x4xf32>, vector<4x128xf32>, vector<512x128xf32> -> vector<512x128xf32>
    %c0_3 = arith.constant 0 : index
    %c0_4 = arith.constant 0 : index
    %3 = vector.load %arg3[%c0_3, %c0_4] : memref<1x128xf32, #tpu.memory_space<vmem>>, vector<1x128xf32>
    %4 = vector.broadcast %3 : vector<1x128xf32> to vector<512x128xf32>
    %5 = arith.addf %2, %4 : vector<512x128xf32>
    %cst_5 = arith.constant 0.000000e+00 : f32
    %6 = vector.broadcast %cst_5 : f32 to vector<512x128xf32>
    %7 = arith.cmpf ogt, %5, %6 : vector<512x128xf32>
    %cst_6 = arith.constant 0.00999999977 : f32
    %8 = vector.broadcast %cst_6 : f32 to vector<512x128xf32>
    %9 = arith.mulf %8, %5 : vector<512x128xf32>
    %10 = arith.select %7, %5, %9 : vector<512x128xi1>, vector<512x128xf32>
    %c0_7 = arith.constant 0 : index
    %c0_8 = arith.constant 0 : index
    %11 = vector.load %arg4[%c0_7, %c0_8] : memref<128x256xf32, #tpu.memory_space<vmem>>, vector<128x256xf32>
    %cst_9 = arith.constant dense<0.000000e+00> : vector<512x256xf32>
    %12 = tpu.matmul %10, %11, %cst_9 {dimension_numbers = #tpu.dot_dimension_numbers<[1], [0], [0], [1], [0, 0, 1, 1], [], []>} : vector<512x128xf32>, vector<128x256xf32>, vector<512x256xf32> -> vector<512x256xf32>
    %c0_10 = arith.constant 0 : index
    %c0_11 = arith.constant 0 : index
    %13 = vector.load %arg5[%c0_10, %c0_11] : memref<1x256xf32, #tpu.memory_space<vmem>>, vector<1x256xf32>
    %14 = vector.broadcast %13 : vector<1x256xf32> to vector<512x256xf32>
    %15 = arith.addf %12, %14 : vector<512x256xf32>
    %c0_12 = arith.constant 0 : index
    %c0_13 = arith.constant 0 : index
    %16 = vector.load %arg6[%c0_12, %c0_13] : memref<512x256xi32, #tpu.memory_space<vmem>>, vector<512x256xi32>
    %c0_14 = arith.constant 0 : index
    %c0_15 = arith.constant 0 : index
    %17 = vector.load %arg7[%c0_14, %c0_15] : memref<1x256xi32, #tpu.memory_space<vmem>>, vector<1x256xi32>
    %18 = vector.broadcast %17 : vector<1x256xi32> to vector<512x256xi32>
    %19 = arith.cmpi eq, %16, %18 : vector<512x256xi32>
    %cst_16 = arith.constant 0.000000e+00 : f32
    %20 = vector.broadcast %cst_16 : f32 to vector<512x256xf32>
    %21 = arith.select %19, %15, %20 : vector<512x256xi1>, vector<512x256xf32>
    %c0_17 = arith.constant 0 : index
    %c0_18 = arith.constant 0 : index
    %22 = vector.load %arg8[%c0_17, %c0_18] : memref<256x8xf32, #tpu.memory_space<vmem>>, vector<256x8xf32>
    %cst_19 = arith.constant dense<0.000000e+00> : vector<512x8xf32>
    %23 = tpu.matmul %21, %22, %cst_19 {dimension_numbers = #tpu.dot_dimension_numbers<[1], [0], [0], [1], [0, 0, 1, 1], [], []>} : vector<512x256xf32>, vector<256x8xf32>, vector<512x8xf32> -> vector<512x8xf32>
    %c0_20 = arith.constant 0 : index
    %c0_21 = arith.constant 0 : index
    %24 = vector.load %arg9[%c0_20, %c0_21] : memref<512x8xf32, #tpu.memory_space<vmem>>, vector<512x8xf32>
    tpu.vector_store %arg9[%c0_20, %c0_21], %23 {strides = array<i32>} : memref<512x8xf32, #tpu.memory_space<vmem>>, vector<512x8xf32>,
    return
  }
  func.func @transform_0(%arg0: i32) -> (i32, i32) {
    %c0_i32 = arith.constant 0 : i32
    %c0_i32_0 = arith.constant 0 : i32
    return %arg0, %c0_i32 : i32, i32
  }
  func.func @transform_1(%arg0: i32) -> (i32, i32) {
    %c0_i32 = arith.constant 0 : i32
    %c0_i32_0 = arith.constant 0 : i32
    %c0_i32_1 = arith.constant 0 : i32
    return %c0_i32, %c0_i32_0 : i32, i32
  }
  func.func @transform_2(%arg0: i32) -> (i32, i32) {
    %c0_i32 = arith.constant 0 : i32
    %c0_i32_0 = arith.constant 0 : i32
    %c0_i32_1 = arith.constant 0 : i32
    return %c0_i32, %c0_i32_0 : i32, i32
  }
  func.func @transform_3(%arg0: i32) -> (i32, i32) {
    %c0_i32 = arith.constant 0 : i32
    %c0_i32_0 = arith.constant 0 : i32
    %c0_i32_1 = arith.constant 0 : i32
    return %c0_i32, %c0_i32_0 : i32, i32
  }
  func.func @transform_4(%arg0: i32) -> (i32, i32) {
    %c0_i32 = arith.constant 0 : i32
    %c0_i32_0 = arith.constant 0 : i32
    %c0_i32_1 = arith.constant 0 : i32
    return %c0_i32, %c0_i32_0 : i32, i32
  }
  func.func @transform_5(%arg0: i32) -> (i32, i32) {
    %c0_i32 = arith.constant 0 : i32
    %c0_i32_0 = arith.constant 0 : i32
    return %arg0, %c0_i32 : i32, i32
  }
  func.func @transform_6(%arg0: i32) -> (i32, i32) {
    %c0_i32 = arith.constant 0 : i32
    %c0_i32_0 = arith.constant 0 : i32
    %c0_i32_1 = arith.constant 0 : i32
    return %c0_i32, %c0_i32_0 : i32, i32
  }
  func.func @transform_7(%arg0: i32) -> (i32, i32) {
    %c0_i32 = arith.constant 0 : i32
    %c0_i32_0 = arith.constant 0 : i32
    %c0_i32_1 = arith.constant 0 : i32
    return %c0_i32, %c0_i32_0 : i32, i32
  }
  func.func @transform_8(%arg0: i32) -> (i32, i32) {
    %c0_i32 = arith.constant 0 : i32
    %c0_i32_0 = arith.constant 0 : i32
    return %arg0, %c0_i32 : i32, i32
  }
}

</mosaic_0001>

<llo_original>
// kernel: tpu_custom_call.1
$region0: #{tpu_custom_call.1}
  #allocation0 [shape = 'u32[]', space=smem, size = 0x4, offset = 0x4, fixed_abs, tag = 'smem constant byte address 0x4 - core index']
  #allocation1 [shape = 'u32[72,128]{1,0:T(1,128)}', space=vmem, size = 0x9000, scoped, tag = 'internal scratch']
  %s0 = inlined_call_operand.vmem [shape: f32[512,4], index: 0, kind: input, shape index: {}]
  %s1 = inlined_call_operand.vmem [shape: f32[4,128], index: 1, kind: input, shape index: {}]
  %s2 = inlined_call_operand.vmem [shape: f32[1,128], index: 2, kind: input, shape index: {}]
  %s3 = inlined_call_operand.vmem [shape: f32[128,256], index: 3, kind: input, shape index: {}]
  %s4 = inlined_call_operand.vmem [shape: f32[1,256], index: 4, kind: input, shape index: {}]
  %s5 = inlined_call_operand.hbm [shape: s32[512,256], index: 5, kind: input, shape index: {}]
  %s6 = inlined_call_operand.vmem [shape: s32[1,256], index: 6, kind: input, shape index: {}]
  %s7 = inlined_call_operand.vmem [shape: f32[256,8], index: 7, kind: input, shape index: {}]
  %s8 = inlined_call_operand.vmem [shape: f32[512,8], index: 8, kind: output, shape index: {}]
  %s9 = sld [smem:[#allocation0]]
  $region46: #{tpu_custom_call.1} parent=0
    _
  %s11 = ssub.s32 1, %s9
  %s12 = scalar_select 0, %s11, %s9
  $region1: #{tpu_custom_call.1} parent=0
    #allocation2 [shape = 'u8[524288]{0}', space=vmem, size = 0x80000, scoped, tag = 'input window, operand 5, single buffered']
    #allocation3 [shape = 's32[1]{0}', space=sflag, size = 0x4, scoped, tag = 'scoped memory for tpu_custom_call.1']
    %13 = vsyncpa [#allocation3], 0
    // Predicated region
    $region2: #{tpu_custom_call.1} parent=1 // pred_check
      _
    $region3: #{tpu_custom_call.1} parent=1 // pred_check_branch
      %15 = sbr.rel (0) target = $region5
    $region4: #{tpu_custom_call.1} parent=1 // pred_region
      _
    $region5: #{tpu_custom_call.1} parent=1 // pred_fallthru
      _
    // Predicated region
    $region6: #{tpu_custom_call.1} parent=1 // pred_check
      _
    $region7: #{tpu_custom_call.1} parent=1 // pred_check_branch
      %17 = sbr.rel (0) target = $region9
    $region8: #{tpu_custom_call.1} parent=1 // pred_region
      _
    $region9: #{tpu_custom_call.1} parent=1 // pred_fallthru
      _
    // Predicated region
    $region10: #{tpu_custom_call.1} parent=1 // pred_check
      _
    $region11: #{tpu_custom_call.1} parent=1 // pred_check_branch
      %19 = sbr.rel (0) target = $region13
    $region12: #{tpu_custom_call.1} parent=1 // pred_region
      _
    $region13: #{tpu_custom_call.1} parent=1 // pred_fallthru
      _
    // Predicated region
    $region14: #{tpu_custom_call.1} parent=1 // pred_check
      _
    $region15: #{tpu_custom_call.1} parent=1 // pred_check_branch
      %21 = sbr.rel (0) target = $region17
    $region16: #{tpu_custom_call.1} parent=1 // pred_region
      _
    $region17: #{tpu_custom_call.1} parent=1 // pred_fallthru
      _
    // Predicated region
    $region18: #{tpu_custom_call.1} parent=1 // pred_check
      _
    $region19: #{tpu_custom_call.1} parent=1 // pred_check_branch
      %23 = sbr.rel (0) target = $region21
    $region20: #{tpu_custom_call.1} parent=1 // pred_region
      _
    $region21: #{tpu_custom_call.1} parent=1 // pred_fallthru
      _
    // Predicated region
    $region22: #{tpu_custom_call.1} parent=1 // pred_check
      _
    $region23: #{tpu_custom_call.1} parent=1 // pred_check_branch
      %25 = sbr.rel (0) target = $region25
    $region24: #{tpu_custom_call.1} parent=1 // pred_region
      %27 = vsyncadd [#allocation3], 0
      %s28 = sshll.u32 %s5, 4
      %s29 = int_to_ptr.hbm [resolvable:$true] %s28
      %s30 = sshll.u32 [#allocation2], 4
      %s31 = int_to_ptr.vmem [resolvable:$true] %s30
      %36 = dma.hbm_to_vmem [thread:$0]  %s29, 16384, %s31, [#allocation3], 256, 256, 16
    $region25: #{tpu_custom_call.1} parent=1 // pred_fallthru
      _
    // Predicated region
    $region26: #{tpu_custom_call.1} parent=1 // pred_check
      _
    $region27: #{tpu_custom_call.1} parent=1 // pred_check_branch
      %38 = sbr.rel (0) target = $region29
    $region28: #{tpu_custom_call.1} parent=1 // pred_region
      _
    $region29: #{tpu_custom_call.1} parent=1 // pred_fallthru
      _
    // Predicated region
    $region30: #{tpu_custom_call.1} parent=1 // pred_check
      _
    $region31: #{tpu_custom_call.1} parent=1 // pred_check_branch
      %40 = sbr.rel (0) target = $region33
    $region32: #{tpu_custom_call.1} parent=1 // pred_region
      _
    $region33: #{tpu_custom_call.1} parent=1 // pred_fallthru
      _
    // Predicated region
    $region34: #{tpu_custom_call.1} parent=1 // pred_check
      _
    $region35: #{tpu_custom_call.1} parent=1 // pred_check_branch
      %42 = sbr.rel (0) target = $region37
    $region36: #{tpu_custom_call.1} parent=1 // pred_region
      %44 = dma.done [#allocation3], 16384
    $region37: #{tpu_custom_call.1} parent=1 // pred_fallthru
      _
    %v45 = vld [vmem:[%s0] sm:$0xff]
    %v46 = vld [vmem:[%s0 + $0x8] sm:$0xff]
    %v47 = vld [vmem:[%s0 + $0x10] sm:$0xff]
    %v48 = vld [vmem:[%s0 + $0x18] sm:$0xff]
    %v49 = vld [vmem:[%s0 + $0x20] sm:$0xff]
    %v50 = vld [vmem:[%s0 + $0x28] sm:$0xff]
    %v51 = vld [vmem:[%s0 + $0x30] sm:$0xff]
    %v52 = vld [vmem:[%s0 + $0x38] sm:$0xff]
    %v53 = vld [vmem:[%s0 + $0x40] sm:$0xff]
    %v54 = vld [vmem:[%s0 + $0x48] sm:$0xff]
    %v55 = vld [vmem:[%s0 + $0x50] sm:$0xff]
    %v56 = vld [vmem:[%s0 + $0x58] sm:$0xff]
    %v57 = vld [vmem:[%s0 + $0x60] sm:$0xff]
    %v58 = vld [vmem:[%s0 + $0x68] sm:$0xff]
    %v59 = vld [vmem:[%s0 + $0x70] sm:$0xff]
    %v60 = vld [vmem:[%s0 + $0x78] sm:$0xff]
    %v61 = vld [vmem:[%s0 + $0x80] sm:$0xff]
    %v62 = vld [vmem:[%s0 + $0x88] sm:$0xff]
    %v63 = vld [vmem:[%s0 + $0x90] sm:$0xff]
    %v64 = vld [vmem:[%s0 + $0x98] sm:$0xff]
    %v65 = vld [vmem:[%s0 + $0xa0] sm:$0xff]
    %v66 = vld [vmem:[%s0 + $0xa8] sm:$0xff]
    %v67 = vld [vmem:[%s0 + $0xb0] sm:$0xff]
    %v68 = vld [vmem:[%s0 + $0xb8] sm:$0xff]
    %v69 = vld [vmem:[%s0 + $0xc0] sm:$0xff]
    %v70 = vld [vmem:[%s0 + $0xc8] sm:$0xff]
    %v71 = vld [vmem:[%s0 + $0xd0] sm:$0xff]
    %v72 = vld [vmem:[%s0 + $0xd8] sm:$0xff]
    %v73 = vld [vmem:[%s0 + $0xe0] sm:$0xff]
    %v74 = vld [vmem:[%s0 + $0xe8] sm:$0xff]
    %v75 = vld [vmem:[%s0 + $0xf0] sm:$0xff]
    %v76 = vld [vmem:[%s0 + $0xf8] sm:$0xff]
    %v77 = vld [vmem:[%s0 + $0x100] sm:$0xff]
    %v78 = vld [vmem:[%s0 + $0x108] sm:$0xff]
    %v79 = vld [vmem:[%s0 + $0x110] sm:$0xff]
    %v80 = vld [vmem:[%s0 + $0x118] sm:$0xff]
    %v81 = vld [vmem:[%s0 + $0x120] sm:$0xff]
    %v82 = vld [vmem:[%s0 + $0x128] sm:$0xff]
    %v83 = vld [vmem:[%s0 + $0x130] sm:$0xff]
    %v84 = vld [vmem:[%s0 + $0x138] sm:$0xff]
    %v85 = vld [vmem:[%s0 + $0x140] sm:$0xff]
    %v86 = vld [vmem:[%s0 + $0x148] sm:$0xff]
    %v87 = vld [vmem:[%s0 + $0x150] sm:$0xff]
    %v88 = vld [vmem:[%s0 + $0x158] sm:$0xff]
    %v89 = vld [vmem:[%s0 + $0x160] sm:$0xff]
    %v90 = vld [vmem:[%s0 + $0x168] sm:$0xff]
    %v91 = vld [vmem:[%s0 + $0x170] sm:$0xff]
    %v92 = vld [vmem:[%s0 + $0x178] sm:$0xff]
    %v93 = vld [vmem:[%s0 + $0x180] sm:$0xff]
    %v94 = vld [vmem:[%s0 + $0x188] sm:$0xff]
    %v95 = vld [vmem:[%s0 + $0x190] sm:$0xff]
    %v96 = vld [vmem:[%s0 + $0x198] sm:$0xff]
    %v97 = vld [vmem:[%s0 + $0x1a0] sm:$0xff]
    %v98 = vld [vmem:[%s0 + $0x1a8] sm:$0xff]
    %v99 = vld [vmem:[%s0 + $0x1b0] sm:$0xff]
    %v100 = vld [vmem:[%s0 + $0x1b8] sm:$0xff]
    %v101 = vld [vmem:[%s0 + $0x1c0] sm:$0xff]
    %v102 = vld [vmem:[%s0 + $0x1c8] sm:$0xff]
    %v103 = vld [vmem:[%s0 + $0x1d0] sm:$0xff]
    %v104 = vld [vmem:[%s0 + $0x1d8] sm:$0xff]
    %v105 = vld [vmem:[%s0 + $0x1e0] sm:$0xff]
    %v106 = vld [vmem:[%s0 + $0x1e8] sm:$0xff]
    %v107 = vld [vmem:[%s0 + $0x1f0] sm:$0xff]
    %v108 = vld [vmem:[%s0 + $0x1f8] sm:$0xff]
    %v109 = vld [vmem:[%s1] sm:$0xf]
    %v110 = vld [vmem:[%s2] sm:$0x1]
    %v112 = vperm.slane %v110, 0
    %vm114 = vcmask 31744
    %v116 = vsel %vm114, %v45, 0
    %v119 = vsel %vm114, %v46, 0
    %v122 = vsel %vm114, %v47, 0
    %v125 = vsel %vm114, %v48, 0
    %v128 = vsel %vm114, %v49, 0
    %v131 = vsel %vm114, %v50, 0
    %v134 = vsel %vm114, %v51, 0
    %v137 = vsel %vm114, %v52, 0
    %v140 = vsel %vm114, %v53, 0
    %v143 = vsel %vm114, %v54, 0
    %v146 = vsel %vm114, %v55, 0
    %v149 = vsel %vm114, %v56, 0
    %v152 = vsel %vm114, %v57, 0
    %v155 = vsel %vm114, %v58, 0
    %v158 = vsel %vm114, %v59, 0
    %v161 = vsel %vm114, %v60, 0
    %v164 = vsel %vm114, %v61, 0
    %v167 = vsel %vm114, %v62, 0
    %v170 = vsel %vm114, %v63, 0
    %v173 = vsel %vm114, %v64, 0
    %v176 = vsel %vm114, %v65, 0
    %v179 = vsel %vm114, %v66, 0
    %v182 = vsel %vm114, %v67, 0
    %v185 = vsel %vm114, %v68, 0
    %v188 = vsel %vm114, %v69, 0
    %v191 = vsel %vm114, %v70, 0
    %v194 = vsel %vm114, %v71, 0
    %v197 = vsel %vm114, %v72, 0
    %v200 = vsel %vm114, %v73, 0
    %v203 = vsel %vm114, %v74, 0
    %v206 = vsel %vm114, %v75, 0
    %v209 = vsel %vm114, %v76, 0
    %v212 = vsel %vm114, %v77, 0
    %v215 = vsel %vm114, %v78, 0
    %v218 = vsel %vm114, %v79, 0
    %v221 = vsel %vm114, %v80, 0
    %v224 = vsel %vm114, %v81, 0
    %v227 = vsel %vm114, %v82, 0
    %v230 = vsel %vm114, %v83, 0
    %v233 = vsel %vm114, %v84, 0
    %v236 = vsel %vm114, %v85, 0
    %v239 = vsel %vm114, %v86, 0
    %v242 = vsel %vm114, %v87, 0
    %v245 = vsel %vm114, %v88, 0
    %v248 = vsel %vm114, %v89, 0
    %v251 = vsel %vm114, %v90, 0
    %v254 = vsel %vm114, %v91, 0
    %v257 = vsel %vm114, %v92, 0
    %v260 = vsel %vm114, %v93, 0
    %v263 = vsel %vm114, %v94, 0
    %v266 = vsel %vm114, %v95, 0
    %v269 = vsel %vm114, %v96, 0
    %v272 = vsel %vm114, %v97, 0
    %v275 = vsel %vm114, %v98, 0
    %v278 = vsel %vm114, %v99, 0
    %v281 = vsel %vm114, %v100, 0
    %v284 = vsel %vm114, %v101, 0
    %v287 = vsel %vm114, %v102, 0
    %v290 = vsel %vm114, %v103, 0
    %v293 = vsel %vm114, %v104, 0
    %v296 = vsel %vm114, %v105, 0
    %v299 = vsel %vm114, %v106, 0
    %v302 = vsel %vm114, %v107, 0
    %v305 = vsel %vm114, %v108, 0
    %vm307 = vcmask 1043456
    %v309 = vsel %vm307, %v109, 0
    %311 = vmatpush.msra.mxu0 0.0
    %312 = vmatpush.msra.mxu0 0.0
    %313 = vmatpush.msra.mxu0 0.0
    %314 = vmatpush.msra.mxu0 0.0
    %315 = vmatpush.msra.mxu0 0.0
    %316 = vmatpush.msra.mxu0 0.0
    %317 = vmatpush.msra.mxu0 0.0
    %318 = vmatpush.msra.mxu0 0.0
    %319 = vmatpush.msra.mxu0 0.0
    %320 = vmatpush.msra.mxu0 0.0
    %321 = vmatpush.msra.mxu0 0.0
    %322 = vmatpush.msra.mxu0 0.0
    %323 = vmatpush.msra.mxu0 0.0
    %324 = vmatpush.msra.mxu0 0.0
    %325 = vmatpush.msra.mxu0 0.0
    %326 = vmatpush.msra.mxu0 %v309
    %327 = vmatmul.f32.gmra.mxu0 %v116
    %v328 = vpop.f32.mrf.mxu0
    %v329 = vadd.f32 %v112, %v328
    %330 = vmatmul.f32.gmra.mxu0 %v119
    %v331 = vpop.f32.mrf.mxu0
    %v332 = vadd.f32 %v112, %v331
    %333 = vmatmul.f32.gmra.mxu0 %v122
    %v334 = vpop.f32.mrf.mxu0
    %v335 = vadd.f32 %v112, %v334
    %336 = vmatmul.f32.gmra.mxu0 %v125
    %v337 = vpop.f32.mrf.mxu0
    %v338 = vadd.f32 %v112, %v337
    %339 = vmatmul.f32.gmra.mxu0 %v128
    %v340 = vpop.f32.mrf.mxu0
    %v341 = vadd.f32 %v112, %v340
    %342 = vmatmul.f32.gmra.mxu0 %v131
    %v343 = vpop.f32.mrf.mxu0
    %v344 = vadd.f32 %v112, %v343
    %345 = vmatmul.f32.gmra.mxu0 %v134
    %v346 = vpop.f32.mrf.mxu0
    %v347 = vadd.f32 %v112, %v346
    %348 = vmatmul.f32.gmra.mxu0 %v137
    %v349 = vpop.f32.mrf.mxu0
    %v350 = vadd.f32 %v112, %v349
    %351 = vmatmul.f32.gmra.mxu0 %v140
    %v352 = vpop.f32.mrf.mxu0
    %v353 = vadd.f32 %v112, %v352
    %354 = vmatmul.f32.gmra.mxu0 %v143
    %v355 = vpop.f32.mrf.mxu0
    %v356 = vadd.f32 %v112, %v355
    %357 = vmatmul.f32.gmra.mxu0 %v146
    %v358 = vpop.f32.mrf.mxu0
    %v359 = vadd.f32 %v112, %v358
    %360 = vmatmul.f32.gmra.mxu0 %v149
    %v361 = vpop.f32.mrf.mxu0
    %v362 = vadd.f32 %v112, %v361
    %363 = vmatmul.f32.gmra.mxu0 %v152
    %v364 = vpop.f32.mrf.mxu0
    %v365 = vadd.f32 %v112, %v364
    %366 = vmatmul.f32.gmra.mxu0 %v155
    %v367 = vpop.f32.mrf.mxu0
    %v368 = vadd.f32 %v112, %v367
    %369 = vmatmul.f32.gmra.mxu0 %v158
    %v370 = vpop.f32.mrf.mxu0
    %v371 = vadd.f32 %v112, %v370
    %372 = vmatmul.f32.gmra.mxu0 %v161
    %v373 = vpop.f32.mrf.mxu0
    %v374 = vadd.f32 %v112, %v373
    %375 = vmatmul.f32.gmra.mxu0 %v164
    %v376 = vpop.f32.mrf.mxu0
    %v377 = vadd.f32 %v112, %v376
    %378 = vmatmul.f32.gmra.mxu0 %v167
    %v379 = vpop.f32.mrf.mxu0
    %v380 = vadd.f32 %v112, %v379
    %381 = vmatmul.f32.gmra.mxu0 %v170
    %v382 = vpop.f32.mrf.mxu0
    %v383 = vadd.f32 %v112, %v382
    %384 = vmatmul.f32.gmra.mxu0 %v173
    %v385 = vpop.f32.mrf.mxu0
    %v386 = vadd.f32 %v112, %v385
    %387 = vmatmul.f32.gmra.mxu0 %v176
    %v388 = vpop.f32.mrf.mxu0
    %v389 = vadd.f32 %v112, %v388
    %390 = vmatmul.f32.gmra.mxu0 %v179
    %v391 = vpop.f32.mrf.mxu0
    %v392 = vadd.f32 %v112, %v391
    %393 = vmatmul.f32.gmra.mxu0 %v182
    %v394 = vpop.f32.mrf.mxu0
    %v395 = vadd.f32 %v112, %v394
    %396 = vmatmul.f32.gmra.mxu0 %v185
    %v397 = vpop.f32.mrf.mxu0
    %v398 = vadd.f32 %v112, %v397
    %399 = vmatmul.f32.gmra.mxu0 %v188
    %v400 = vpop.f32.mrf.mxu0
    %v401 = vadd.f32 %v112, %v400
    %402 = vmatmul.f32.gmra.mxu0 %v191
    %v403 = vpop.f32.mrf.mxu0
    %v404 = vadd.f32 %v112, %v403
    %405 = vmatmul.f32.gmra.mxu0 %v194
    %v406 = vpop.f32.mrf.mxu0
    %v407 = vadd.f32 %v112, %v406
    %408 = vmatmul.f32.gmra.mxu0 %v197
    %v409 = vpop.f32.mrf.mxu0
    %v410 = vadd.f32 %v112, %v409
    %411 = vmatmul.f32.gmra.mxu0 %v200
    %v412 = vpop.f32.mrf.mxu0
    %v413 = vadd.f32 %v112, %v412
    %414 = vmatmul.f32.gmra.mxu0 %v203
    %v415 = vpop.f32.mrf.mxu0
    %v416 = vadd.f32 %v112, %v415
    %417 = vmatmul.f32.gmra.mxu0 %v206
    %v418 = vpop.f32.mrf.mxu0
    %v419 = vadd.f32 %v112, %v418
    %420 = vmatmul.f32.gmra.mxu0 %v209
    %v421 = vpop.f32.mrf.mxu0
    %v422 = vadd.f32 %v112, %v421
    %423 = vmatmul.f32.gmra.mxu0 %v212
    %v424 = vpop.f32.mrf.mxu0
    %v425 = vadd.f32 %v112, %v424
    %426 = vmatmul.f32.gmra.mxu0 %v215
    %v427 = vpop.f32.mrf.mxu0
    %v428 = vadd.f32 %v112, %v427
    %429 = vmatmul.f32.gmra.mxu0 %v218
    %v430 = vpop.f32.mrf.mxu0
    %v431 = vadd.f32 %v112, %v430
    %432 = vmatmul.f32.gmra.mxu0 %v221
    %v433 = vpop.f32.mrf.mxu0
    %v434 = vadd.f32 %v112, %v433
    %435 = vmatmul.f32.gmra.mxu0 %v224
    %v436 = vpop.f32.mrf.mxu0
    %v437 = vadd.f32 %v112, %v436
    %438 = vmatmul.f32.gmra.mxu0 %v227
    %v439 = vpop.f32.mrf.mxu0
    %v440 = vadd.f32 %v112, %v439
    %441 = vmatmul.f32.gmra.mxu0 %v230
    %v442 = vpop.f32.mrf.mxu0
    %v443 = vadd.f32 %v112, %v442
    %444 = vmatmul.f32.gmra.mxu0 %v233
    %v445 = vpop.f32.mrf.mxu0
    %v446 = vadd.f32 %v112, %v445
    %447 = vmatmul.f32.gmra.mxu0 %v236
    %v448 = vpop.f32.mrf.mxu0
    %v449 = vadd.f32 %v112, %v448
    %450 = vmatmul.f32.gmra.mxu0 %v239
    %v451 = vpop.f32.mrf.mxu0
    %v452 = vadd.f32 %v112, %v451
    %453 = vmatmul.f32.gmra.mxu0 %v242
    %v454 = vpop.f32.mrf.mxu0
    %v455 = vadd.f32 %v112, %v454
    %456 = vmatmul.f32.gmra.mxu0 %v245
    %v457 = vpop.f32.mrf.mxu0
    %v458 = vadd.f32 %v112, %v457
    %459 = vmatmul.f32.gmra.mxu0 %v248
    %v460 = vpop.f32.mrf.mxu0
    %v461 = vadd.f32 %v112, %v460
    %462 = vmatmul.f32.gmra.mxu0 %v251
    %v463 = vpop.f32.mrf.mxu0
    %v464 = vadd.f32 %v112, %v463
    %465 = vmatmul.f32.gmra.mxu0 %v254
    %v466 = vpop.f32.mrf.mxu0
    %v467 = vadd.f32 %v112, %v466
    %468 = vmatmul.f32.gmra.mxu0 %v257
    %v469 = vpop.f32.mrf.mxu0
    %v470 = vadd.f32 %v112, %v469
    %471 = vmatmul.f32.gmra.mxu0 %v260
    %v472 = vpop.f32.mrf.mxu0
    %v473 = vadd.f32 %v112, %v472
    %474 = vmatmul.f32.gmra.mxu0 %v263
    %v475 = vpop.f32.mrf.mxu0
    %v476 = vadd.f32 %v112, %v475
    %477 = vmatmul.f32.gmra.mxu0 %v266
    %v478 = vpop.f32.mrf.mxu0
    %v479 = vadd.f32 %v112, %v478
    %480 = vmatmul.f32.gmra.mxu0 %v269
    %v481 = vpop.f32.mrf.mxu0
    %v482 = vadd.f32 %v112, %v481
    %483 = vmatmul.f32.gmra.mxu0 %v272
    %v484 = vpop.f32.mrf.mxu0
    %v485 = vadd.f32 %v112, %v484
    %486 = vmatmul.f32.gmra.mxu0 %v275
    %v487 = vpop.f32.mrf.mxu0
    %v488 = vadd.f32 %v112, %v487
    %489 = vmatmul.f32.gmra.mxu0 %v278
    %v490 = vpop.f32.mrf.mxu0
    %v491 = vadd.f32 %v112, %v490
    %492 = vmatmul.f32.gmra.mxu0 %v281
    %v493 = vpop.f32.mrf.mxu0
    %v494 = vadd.f32 %v112, %v493
    %495 = vmatmul.f32.gmra.mxu0 %v284
    %v496 = vpop.f32.mrf.mxu0
    %v497 = vadd.f32 %v112, %v496
    %498 = vmatmul.f32.gmra.mxu0 %v287
    %v499 = vpop.f32.mrf.mxu0
    %v500 = vadd.f32 %v112, %v499
    %501 = vmatmul.f32.gmra.mxu0 %v290
    %v502 = vpop.f32.mrf.mxu0
    %v503 = vadd.f32 %v112, %v502
    %504 = vmatmul.f32.gmra.mxu0 %v293
    %v505 = vpop.f32.mrf.mxu0
    %v506 = vadd.f32 %v112, %v505
    %507 = vmatmul.f32.gmra.mxu0 %v296
    %v508 = vpop.f32.mrf.mxu0
    %v509 = vadd.f32 %v112, %v508
    %510 = vmatmul.f32.gmra.mxu0 %v299
    %v511 = vpop.f32.mrf.mxu0
    %v512 = vadd.f32 %v112, %v511
    %513 = vmatmul.f32.gmra.mxu0 %v302
    %v514 = vpop.f32.mrf.mxu0
    %v515 = vadd.f32 %v112, %v514
    %516 = vmatmul.f32.gmra.mxu0 %v305
    %v517 = vpop.f32.mrf.mxu0
    %v518 = vadd.f32 %v112, %v517
    %519 = vdwg.mxu0
    %vm520 = vcmp.gt.f32.partialorder %v329, 0.0
    %vm521 = vcmp.gt.f32.partialorder %v332, 0.0
    %vm522 = vcmp.gt.f32.partialorder %v335, 0.0
    %vm523 = vcmp.gt.f32.partialorder %v338, 0.0
    %vm524 = vcmp.gt.f32.partialorder %v341, 0.0
    %vm525 = vcmp.gt.f32.partialorder %v344, 0.0
    %vm526 = vcmp.gt.f32.partialorder %v347, 0.0
    %vm527 = vcmp.gt.f32.partialorder %v350, 0.0
    %vm528 = vcmp.gt.f32.partialorder %v353, 0.0
    %vm529 = vcmp.gt.f32.partialorder %v356, 0.0
    %vm530 = vcmp.gt.f32.partialorder %v359, 0.0
    %vm531 = vcmp.gt.f32.partialorder %v362, 0.0
    %vm532 = vcmp.gt.f32.partialorder %v365, 0.0
    %vm533 = vcmp.gt.f32.partialorder %v368, 0.0
    %vm534 = vcmp.gt.f32.partialorder %v371, 0.0
    %vm535 = vcmp.gt.f32.partialorder %v374, 0.0
    %vm536 = vcmp.gt.f32.partialorder %v377, 0.0
    %vm537 = vcmp.gt.f32.partialorder %v380, 0.0
    %vm538 = vcmp.gt.f32.partialorder %v383, 0.0
    %vm539 = vcmp.gt.f32.partialorder %v386, 0.0
    %vm540 = vcmp.gt.f32.partialorder %v389, 0.0
    %vm541 = vcmp.gt.f32.partialorder %v392, 0.0
    %vm542 = vcmp.gt.f32.partialorder %v395, 0.0
    %vm543 = vcmp.gt.f32.partialorder %v398, 0.0
    %vm544 = vcmp.gt.f32.partialorder %v401, 0.0
    %vm545 = vcmp.gt.f32.partialorder %v404, 0.0
    %vm546 = vcmp.gt.f32.partialorder %v407, 0.0
    %vm547 = vcmp.gt.f32.partialorder %v410, 0.0
    %vm548 = vcmp.gt.f32.partialorder %v413, 0.0
    %vm549 = vcmp.gt.f32.partialorder %v416, 0.0
    %vm550 = vcmp.gt.f32.partialorder %v419, 0.0
    %vm551 = vcmp.gt.f32.partialorder %v422, 0.0
    %vm552 = vcmp.gt.f32.partialorder %v425, 0.0
    %vm553 = vcmp.gt.f32.partialorder %v428, 0.0
    %vm554 = vcmp.gt.f32.partialorder %v431, 0.0
    %vm555 = vcmp.gt.f32.partialorder %v434, 0.0
    %vm556 = vcmp.gt.f32.partialorder %v437, 0.0
    %vm557 = vcmp.gt.f32.partialorder %v440, 0.0
    %vm558 = vcmp.gt.f32.partialorder %v443, 0.0
    %vm559 = vcmp.gt.f32.partialorder %v446, 0.0
    %vm560 = vcmp.gt.f32.partialorder %v449, 0.0
    %vm561 = vcmp.gt.f32.partialorder %v452, 0.0
    %vm562 = vcmp.gt.f32.partialorder %v455, 0.0
    %vm563 = vcmp.gt.f32.partialorder %v458, 0.0
    %vm564 = vcmp.gt.f32.partialorder %v461, 0.0
    %vm565 = vcmp.gt.f32.partialorder %v464, 0.0
    %vm566 = vcmp.gt.f32.partialorder %v467, 0.0
    %vm567 = vcmp.gt.f32.partialorder %v470, 0.0
    %vm568 = vcmp.gt.f32.partialorder %v473, 0.0
    %vm569 = vcmp.gt.f32.partialorder %v476, 0.0
    %vm570 = vcmp.gt.f32.partialorder %v479, 0.0
    %vm571 = vcmp.gt.f32.partialorder %v482, 0.0
    %vm572 = vcmp.gt.f32.partialorder %v485, 0.0
    %vm573 = vcmp.gt.f32.partialorder %v488, 0.0
    %vm574 = vcmp.gt.f32.partialorder %v491, 0.0
    %vm575 = vcmp.gt.f32.partialorder %v494, 0.0
    %vm576 = vcmp.gt.f32.partialorder %v497, 0.0
    %vm577 = vcmp.gt.f32.partialorder %v500, 0.0
    %vm578 = vcmp.gt.f32.partialorder %v503, 0.0
    %vm579 = vcmp.gt.f32.partialorder %v506, 0.0
    %vm580 = vcmp.gt.f32.partialorder %v509, 0.0
    %vm581 = vcmp.gt.f32.partialorder %v512, 0.0
    %vm582 = vcmp.gt.f32.partialorder %v515, 0.0
    %vm583 = vcmp.gt.f32.partialorder %v518, 0.0
    %v584 = vmul.f32 %v329, 0.01
    %v585 = vmul.f32 %v332, 0.01
    %v586 = vmul.f32 %v335, 0.01
    %v587 = vmul.f32 %v338, 0.01
    %v588 = vmul.f32 %v341, 0.01
    %v589 = vmul.f32 %v344, 0.01
    %v590 = vmul.f32 %v347, 0.01
    %v591 = vmul.f32 %v350, 0.01
    %v592 = vmul.f32 %v353, 0.01
    %v593 = vmul.f32 %v356, 0.01
    %v594 = vmul.f32 %v359, 0.01
    %v595 = vmul.f32 %v362, 0.01
    %v596 = vmul.f32 %v365, 0.01
    %v597 = vmul.f32 %v368, 0.01
    %v598 = vmul.f32 %v371, 0.01
    %v599 = vmul.f32 %v374, 0.01
    %v600 = vmul.f32 %v377, 0.01
    %v601 = vmul.f32 %v380, 0.01
    %v602 = vmul.f32 %v383, 0.01
    %v603 = vmul.f32 %v386, 0.01
    %v604 = vmul.f32 %v389, 0.01
    %v605 = vmul.f32 %v392, 0.01
    %v606 = vmul.f32 %v395, 0.01
    %v607 = vmul.f32 %v398, 0.01
    %v608 = vmul.f32 %v401, 0.01
    %v609 = vmul.f32 %v404, 0.01
    %v610 = vmul.f32 %v407, 0.01
    %v611 = vmul.f32 %v410, 0.01
    %v612 = vmul.f32 %v413, 0.01
    %v613 = vmul.f32 %v416, 0.01
    %v614 = vmul.f32 %v419, 0.01
    %v615 = vmul.f32 %v422, 0.01
    %v616 = vmul.f32 %v425, 0.01
    %v617 = vmul.f32 %v428, 0.01
    %v618 = vmul.f32 %v431, 0.01
    %v619 = vmul.f32 %v434, 0.01
    %v620 = vmul.f32 %v437, 0.01
    %v621 = vmul.f32 %v440, 0.01
    %v622 = vmul.f32 %v443, 0.01
    %v623 = vmul.f32 %v446, 0.01
    %v624 = vmul.f32 %v449, 0.01
    %v625 = vmul.f32 %v452, 0.01
    %v626 = vmul.f32 %v455, 0.01
    %v627 = vmul.f32 %v458, 0.01
    %v628 = vmul.f32 %v461, 0.01
    %v629 = vmul.f32 %v464, 0.01
    %v630 = vmul.f32 %v467, 0.01
    %v631 = vmul.f32 %v470, 0.01
    %v632 = vmul.f32 %v473, 0.01
    %v633 = vmul.f32 %v476, 0.01
    %v634 = vmul.f32 %v479, 0.01
    %v635 = vmul.f32 %v482, 0.01
    %v636 = vmul.f32 %v485, 0.01
    %v637 = vmul.f32 %v488, 0.01
    %v638 = vmul.f32 %v491, 0.01
    %v639 = vmul.f32 %v494, 0.01
    %v640 = vmul.f32 %v497, 0.01
    %v641 = vmul.f32 %v500, 0.01
    %v642 = vmul.f32 %v503, 0.01
    %v643 = vmul.f32 %v506, 0.01
    %v644 = vmul.f32 %v509, 0.01
    %v645 = vmul.f32 %v512, 0.01
    %v646 = vmul.f32 %v515, 0.01
    %v647 = vmul.f32 %v518, 0.01
    %v648 = vsel %vm520, %v329, %v584
    %v649 = vsel %vm521, %v332, %v585
    %v650 = vsel %vm522, %v335, %v586
    %v651 = vsel %vm523, %v338, %v587
    %v652 = vsel %vm524, %v341, %v588
    %v653 = vsel %vm525, %v344, %v589
    %v654 = vsel %vm526, %v347, %v590
    %v655 = vsel %vm527, %v350, %v591
    %v656 = vsel %vm528, %v353, %v592
    %v657 = vsel %vm529, %v356, %v593
    %v658 = vsel %vm530, %v359, %v594
    %v659 = vsel %vm531, %v362, %v595
    %v660 = vsel %vm532, %v365, %v596
    %v661 = vsel %vm533, %v368, %v597
    %v662 = vsel %vm534, %v371, %v598
    %v663 = vsel %vm535, %v374, %v599
    %v664 = vsel %vm536, %v377, %v600
    %v665 = vsel %vm537, %v380, %v601
    %v666 = vsel %vm538, %v383, %v602
    %v667 = vsel %vm539, %v386, %v603
    %v668 = vsel %vm540, %v389, %v604
    %v669 = vsel %vm541, %v392, %v605
    %v670 = vsel %vm542, %v395, %v606
    %v671 = vsel %vm543, %v398, %v607
    %v672 = vsel %vm544, %v401, %v608
    %v673 = vsel %vm545, %v404, %v609
    %v674 = vsel %vm546, %v407, %v610
    %v675 = vsel %vm547, %v410, %v611
    %v676 = vsel %vm548, %v413, %v612
    %v677 = vsel %vm549, %v416, %v613
    %v678 = vsel %vm550, %v419, %v614
    %v679 = vsel %vm551, %v422, %v615
    %v680 = vsel %vm552, %v425, %v616
    %v681 = vsel %vm553, %v428, %v617
    %v682 = vsel %vm554, %v431, %v618
    %v683 = vsel %vm555, %v434, %v619
    %v684 = vsel %vm556, %v437, %v620
    %v685 = vsel %vm557, %v440, %v621
    %v686 = vsel %vm558, %v443, %v622
    %v687 = vsel %vm559, %v446, %v623
    %v688 = vsel %vm560, %v449, %v624
    %v689 = vsel %vm561, %v452, %v625
    %v690 = vsel %vm562, %v455, %v626
    %v691 = vsel %vm563, %v458, %v627
    %v692 = vsel %vm564, %v461, %v628
    %v693 = vsel %vm565, %v464, %v629
    %v694 = vsel %vm566, %v467, %v630
    %v695 = vsel %vm567, %v470, %v631
    %v696 = vsel %vm568, %v473, %v632
    %v697 = vsel %vm569, %v476, %v633
    %v698 = vsel %vm570, %v479, %v634
    %v699 = vsel %vm571, %v482, %v635
    %v700 = vsel %vm572, %v485, %v636
    %v701 = vsel %vm573, %v488, %v637
    %v702 = vsel %vm574, %v491, %v638
    %v703 = vsel %vm575, %v494, %v639
    %v704 = vsel %vm576, %v497, %v640
    %v705 = vsel %vm577, %v500, %v641
    %v706 = vsel %vm578, %v503, %v642
    %v707 = vsel %vm579, %v506, %v643
    %v708 = vsel %vm580, %v509, %v644
    %v709 = vsel %vm581, %v512, %v645
    %v710 = vsel %vm582, %v515, %v646
    %v711 = vsel %vm583, %v518, %v647
    %v712 = vld [vmem:[%s3] sm:$0xff]
    %v713 = vld [vmem:[%s3 + $0x8] sm:$0xff]
    %v714 = vld [vmem:[%s3 + $0x10] sm:$0xff]
    %v715 = vld [vmem:[%s3 + $0x18] sm:$0xff]
    %v716 = vld [vmem:[%s3 + $0x20] sm:$0xff]
    %v717 = vld [vmem:[%s3 + $0x28] sm:$0xff]
    %v718 = vld [vmem:[%s3 + $0x30] sm:$0xff]
    %v719 = vld [vmem:[%s3 + $0x38] sm:$0xff]
    %v720 = vld [vmem:[%s3 + $0x40] sm:$0xff]
    %v721 = vld [vmem:[%s3 + $0x48] sm:$0xff]
    %v722 = vld [vmem:[%s3 + $0x50] sm:$0xff]
    %v723 = vld [vmem:[%s3 + $0x58] sm:$0xff]
    %v724 = vld [vmem:[%s3 + $0x60] sm:$0xff]
    %v725 = vld [vmem:[%s3 + $0x68] sm:$0xff]
    %v726 = vld [vmem:[%s3 + $0x70] sm:$0xff]
    %v727 = vld [vmem:[%s3 + $0x78] sm:$0xff]
    %v728 = vld [vmem:[%s3 + $0x80] sm:$0xff]
    %v729 = vld [vmem:[%s3 + $0x88] sm:$0xff]
    %v730 = vld [vmem:[%s3 + $0x90] sm:$0xff]
    %v731 = vld [vmem:[%s3 + $0x98] sm:$0xff]
    %v732 = vld [vmem:[%s3 + $0xa0] sm:$0xff]
    %v733 = vld [vmem:[%s3 + $0xa8] sm:$0xff]
    %v734 = vld [vmem:[%s3 + $0xb0] sm:$0xff]
    %v735 = vld [vmem:[%s3 + $0xb8] sm:$0xff]
    %v736 = vld [vmem:[%s3 + $0xc0] sm:$0xff]
    %v737 = vld [vmem:[%s3 + $0xc8] sm:$0xff]
    %v738 = vld [vmem:[%s3 + $0xd0] sm:$0xff]
    %v739 = vld [vmem:[%s3 + $0xd8] sm:$0xff]
    %v740 = vld [vmem:[%s3 + $0xe0] sm:$0xff]
    %v741 = vld [vmem:[%s3 + $0xe8] sm:$0xff]
    %v742 = vld [vmem:[%s3 + $0xf0] sm:$0xff]
    %v743 = vld [vmem:[%s3 + $0xf8] sm:$0xff]
    %v744 = vld [vmem:[%s4] sm:$0x3]
    %v746 = vperm.slane %v744, 0
    %v747 = vperm.slane %v744, 1
    %750 = vmatpush.msra.mxu0 %v742
    %751 = vmatpush.msra.mxu0 %v740
    %752 = vmatpush.msra.mxu0 %v738
    %753 = vmatpush.msra.mxu0 %v736
    %754 = vmatpush.msra.mxu0 %v734
    %755 = vmatpush.msra.mxu0 %v732
    %756 = vmatpush.msra.mxu0 %v730
    %757 = vmatpush.msra.mxu0 %v728
    %758 = vmatpush.msra.mxu0 %v726
    %759 = vmatpush.msra.mxu0 %v724
    %760 = vmatpush.msra.mxu0 %v722
    %761 = vmatpush.msra.mxu0 %v720
    %762 = vmatpush.msra.mxu0 %v718
    %763 = vmatpush.msra.mxu0 %v716
    %764 = vmatpush.msra.mxu0 %v714
    %765 = vmatpush.msra.mxu0 %v712
    %766 = vmatmul.f32.gmra.mxu0 %v648
    %v767 = vpop.f32.mrf.mxu0
    %v768 = vadd.f32 %v746, %v767
    %769 = vmatmul.f32.gmra.mxu0 %v649
    %v770 = vpop.f32.mrf.mxu0
    %v771 = vadd.f32 %v746, %v770
    %772 = vmatmul.f32.gmra.mxu0 %v650
    %v773 = vpop.f32.mrf.mxu0
    %v774 = vadd.f32 %v746, %v773
    %775 = vmatmul.f32.gmra.mxu0 %v651
    %v776 = vpop.f32.mrf.mxu0
    %v777 = vadd.f32 %v746, %v776
    %778 = vmatmul.f32.gmra.mxu0 %v652
    %v779 = vpop.f32.mrf.mxu0
    %v780 = vadd.f32 %v746, %v779
    %781 = vmatmul.f32.gmra.mxu0 %v653
    %v782 = vpop.f32.mrf.mxu0
    %v783 = vadd.f32 %v746, %v782
    %784 = vmatmul.f32.gmra.mxu0 %v654
    %v785 = vpop.f32.mrf.mxu0
    %v786 = vadd.f32 %v746, %v785
    %787 = vmatmul.f32.gmra.mxu0 %v655
    %v788 = vpop.f32.mrf.mxu0
    %v789 = vadd.f32 %v746, %v788
    %790 = vmatmul.f32.gmra.mxu0 %v656
    %v791 = vpop.f32.mrf.mxu0
    %v792 = vadd.f32 %v746, %v791
    %793 = vmatmul.f32.gmra.mxu0 %v657
    %v794 = vpop.f32.mrf.mxu0
    %v795 = vadd.f32 %v746, %v794
    %796 = vmatmul.f32.gmra.mxu0 %v658
    %v797 = vpop.f32.mrf.mxu0
    %v798 = vadd.f32 %v746, %v797
    %799 = vmatmul.f32.gmra.mxu0 %v659
    %v800 = vpop.f32.mrf.mxu0
    %v801 = vadd.f32 %v746, %v800
    %802 = vmatmul.f32.gmra.mxu0 %v660
    %v803 = vpop.f32.mrf.mxu0
    %v804 = vadd.f32 %v746, %v803
    %805 = vmatmul.f32.gmra.mxu0 %v661
    %v806 = vpop.f32.mrf.mxu0
    %v807 = vadd.f32 %v746, %v806
    %808 = vmatmul.f32.gmra.mxu0 %v662
    %v809 = vpop.f32.mrf.mxu0
    %v810 = vadd.f32 %v746, %v809
    %811 = vmatmul.f32.gmra.mxu0 %v663
    %v812 = vpop.f32.mrf.mxu0
    %v813 = vadd.f32 %v746, %v812
    %814 = vmatmul.f32.gmra.mxu0 %v664
    %v815 = vpop.f32.mrf.mxu0
    %v816 = vadd.f32 %v746, %v815
    %817 = vmatmul.f32.gmra.mxu0 %v665
    %v818 = vpop.f32.mrf.mxu0
    %v819 = vadd.f32 %v746, %v818
    %820 = vmatmul.f32.gmra.mxu0 %v666
    %v821 = vpop.f32.mrf.mxu0
    %v822 = vadd.f32 %v746, %v821
    %823 = vmatmul.f32.gmra.mxu0 %v667
    %v824 = vpop.f32.mrf.mxu0
    %v825 = vadd.f32 %v746, %v824
    %826 = vmatmul.f32.gmra.mxu0 %v668
    %v827 = vpop.f32.mrf.mxu0
    %v828 = vadd.f32 %v746, %v827
    %829 = vmatmul.f32.gmra.mxu0 %v669
    %v830 = vpop.f32.mrf.mxu0
    %v831 = vadd.f32 %v746, %v830
    %832 = vmatmul.f32.gmra.mxu0 %v670
    %v833 = vpop.f32.mrf.mxu0
    %v834 = vadd.f32 %v746, %v833
    %835 = vmatmul.f32.gmra.mxu0 %v671
    %v836 = vpop.f32.mrf.mxu0
    %v837 = vadd.f32 %v746, %v836
    %838 = vmatmul.f32.gmra.mxu0 %v672
    %v839 = vpop.f32.mrf.mxu0
    %v840 = vadd.f32 %v746, %v839
    %841 = vmatmul.f32.gmra.mxu0 %v673
    %v842 = vpop.f32.mrf.mxu0
    %v843 = vadd.f32 %v746, %v842
    %844 = vmatmul.f32.gmra.mxu0 %v674
    %v845 = vpop.f32.mrf.mxu0
    %v846 = vadd.f32 %v746, %v845
    %847 = vmatmul.f32.gmra.mxu0 %v675
    %v848 = vpop.f32.mrf.mxu0
    %v849 = vadd.f32 %v746, %v848
    %850 = vmatmul.f32.gmra.mxu0 %v676
    %v851 = vpop.f32.mrf.mxu0
    %v852 = vadd.f32 %v746, %v851
    %853 = vmatmul.f32.gmra.mxu0 %v677
    %v854 = vpop.f32.mrf.mxu0
    %v855 = vadd.f32 %v746, %v854
    %856 = vmatmul.f32.gmra.mxu0 %v678
    %v857 = vpop.f32.mrf.mxu0
    %v858 = vadd.f32 %v746, %v857
    %859 = vmatmul.f32.gmra.mxu0 %v679
    %v860 = vpop.f32.mrf.mxu0
    %v861 = vadd.f32 %v746, %v860
    %862 = vmatmul.f32.gmra.mxu0 %v680
    %v863 = vpop.f32.mrf.mxu0
    %v864 = vadd.f32 %v746, %v863
    %865 = vmatmul.f32.gmra.mxu0 %v681
    %v866 = vpop.f32.mrf.mxu0
    %v867 = vadd.f32 %v746, %v866
    %868 = vmatmul.f32.gmra.mxu0 %v682
    %v869 = vpop.f32.mrf.mxu0
    %v870 = vadd.f32 %v746, %v869
    %871 = vmatmul.f32.gmra.mxu0 %v683
    %v872 = vpop.f32.mrf.mxu0
    %v873 = vadd.f32 %v746, %v872
    %874 = vmatmul.f32.gmra.mxu0 %v684
    %v875 = vpop.f32.mrf.mxu0
    %v876 = vadd.f32 %v746, %v875
    %877 = vmatmul.f32.gmra.mxu0 %v685
    %v878 = vpop.f32.mrf.mxu0
    %v879 = vadd.f32 %v746, %v878
    %880 = vmatmul.f32.gmra.mxu0 %v686
    %v881 = vpop.f32.mrf.mxu0
    %v882 = vadd.f32 %v746, %v881
    %883 = vmatmul.f32.gmra.mxu0 %v687
    %v884 = vpop.f32.mrf.mxu0
    %v885 = vadd.f32 %v746, %v884
    %886 = vmatmul.f32.gmra.mxu0 %v688
    %v887 = vpop.f32.mrf.mxu0
    %v888 = vadd.f32 %v746, %v887
    %889 = vmatmul.f32.gmra.mxu0 %v689
    %v890 = vpop.f32.mrf.mxu0
    %v891 = vadd.f32 %v746, %v890
    %892 = vmatmul.f32.gmra.mxu0 %v690
    %v893 = vpop.f32.mrf.mxu0
    %v894 = vadd.f32 %v746, %v893
    %895 = vmatmul.f32.gmra.mxu0 %v691
    %v896 = vpop.f32.mrf.mxu0
    %v897 = vadd.f32 %v746, %v896
    %898 = vmatmul.f32.gmra.mxu0 %v692
    %v899 = vpop.f32.mrf.mxu0
    %v900 = vadd.f32 %v746, %v899
    %901 = vmatmul.f32.gmra.mxu0 %v693
    %v902 = vpop.f32.mrf.mxu0
    %v903 = vadd.f32 %v746, %v902
    %904 = vmatmul.f32.gmra.mxu0 %v694
    %v905 = vpop.f32.mrf.mxu0
    %v906 = vadd.f32 %v746, %v905
    %907 = vmatmul.f32.gmra.mxu0 %v695
    %v908 = vpop.f32.mrf.mxu0
    %v909 = vadd.f32 %v746, %v908
    %910 = vmatmul.f32.gmra.mxu0 %v696
    %v911 = vpop.f32.mrf.mxu0
    %v912 = vadd.f32 %v746, %v911
    %913 = vmatmul.f32.gmra.mxu0 %v697
    %v914 = vpop.f32.mrf.mxu0
    %v915 = vadd.f32 %v746, %v914
    %916 = vmatmul.f32.gmra.mxu0 %v698
    %v917 = vpop.f32.mrf.mxu0
    %v918 = vadd.f32 %v746, %v917
    %919 = vmatmul.f32.gmra.mxu0 %v699
    %v920 = vpop.f32.mrf.mxu0
    %v921 = vadd.f32 %v746, %v920
    %922 = vmatmul.f32.gmra.mxu0 %v700
    %v923 = vpop.f32.mrf.mxu0
    %v924 = vadd.f32 %v746, %v923
    %925 = vmatmul.f32.gmra.mxu0 %v701
    %v926 = vpop.f32.mrf.mxu0
    %v927 = vadd.f32 %v746, %v926
    %928 = vmatmul.f32.gmra.mxu0 %v702
    %v929 = vpop.f32.mrf.mxu0
    %v930 = vadd.f32 %v746, %v929
    %931 = vmatmul.f32.gmra.mxu0 %v703
    %v932 = vpop.f32.mrf.mxu0
    %v933 = vadd.f32 %v746, %v932
    %934 = vmatmul.f32.gmra.mxu0 %v704
    %v935 = vpop.f32.mrf.mxu0
    %v936 = vadd.f32 %v746, %v935
    %937 = vmatmul.f32.gmra.mxu0 %v705
    %v938 = vpop.f32.mrf.mxu0
    %v939 = vadd.f32 %v746, %v938
    %940 = vmatmul.f32.gmra.mxu0 %v706
    %v941 = vpop.f32.mrf.mxu0
    %v942 = vadd.f32 %v746, %v941
    %943 = vmatmul.f32.gmra.mxu0 %v707
    %v944 = vpop.f32.mrf.mxu0
    %v945 = vadd.f32 %v746, %v944
    %946 = vmatmul.f32.gmra.mxu0 %v708
    %v947 = vpop.f32.mrf.mxu0
    %v948 = vadd.f32 %v746, %v947
    %949 = vmatmul.f32.gmra.mxu0 %v709
    %v950 = vpop.f32.mrf.mxu0
    %v951 = vadd.f32 %v746, %v950
    %952 = vmatmul.f32.gmra.mxu0 %v710
    %v953 = vpop.f32.mrf.mxu0
    %v954 = vadd.f32 %v746, %v953
    %955 = vmatmul.f32.gmra.mxu0 %v711
    %v956 = vpop.f32.mrf.mxu0
    %v957 = vadd.f32 %v746, %v956
    %958 = vdwg.mxu0
    %959 = vmatpush.msra.mxu0 %v743
    %960 = vmatpush.msra.mxu0 %v741
    %961 = vmatpush.msra.mxu0 %v739
    %962 = vmatpush.msra.mxu0 %v737
    %963 = vmatpush.msra.mxu0 %v735
    %964 = vmatpush.msra.mxu0 %v733
    %965 = vmatpush.msra.mxu0 %v731
    %966 = vmatpush.msra.mxu0 %v729
    %967 = vmatpush.msra.mxu0 %v727
    %968 = vmatpush.msra.mxu0 %v725
    %969 = vmatpush.msra.mxu0 %v723
    %970 = vmatpush.msra.mxu0 %v721
    %971 = vmatpush.msra.mxu0 %v719
    %972 = vmatpush.msra.mxu0 %v717
    %973 = vmatpush.msra.mxu0 %v715
    %974 = vmatpush.msra.mxu0 %v713
    %975 = vmatmul.f32.gmra.mxu0 %v648
    %v976 = vpop.f32.mrf.mxu0
    %v977 = vadd.f32 %v747, %v976
    %978 = vmatmul.f32.gmra.mxu0 %v649
    %v979 = vpop.f32.mrf.mxu0
    %v980 = vadd.f32 %v747, %v979
    %981 = vmatmul.f32.gmra.mxu0 %v650
    %v982 = vpop.f32.mrf.mxu0
    %v983 = vadd.f32 %v747, %v982
    %984 = vmatmul.f32.gmra.mxu0 %v651
    %v985 = vpop.f32.mrf.mxu0
    %v986 = vadd.f32 %v747, %v985
    %987 = vmatmul.f32.gmra.mxu0 %v652
    %v988 = vpop.f32.mrf.mxu0
    %v989 = vadd.f32 %v747, %v988
    %990 = vmatmul.f32.gmra.mxu0 %v653
    %v991 = vpop.f32.mrf.mxu0
    %v992 = vadd.f32 %v747, %v991
    %993 = vmatmul.f32.gmra.mxu0 %v654
    %v994 = vpop.f32.mrf.mxu0
    %v995 = vadd.f32 %v747, %v994
    %996 = vmatmul.f32.gmra.mxu0 %v655
    %v997 = vpop.f32.mrf.mxu0
    %v998 = vadd.f32 %v747, %v997
    %999 = vmatmul.f32.gmra.mxu0 %v656
    %v1000 = vpop.f32.mrf.mxu0
    %v1001 = vadd.f32 %v747, %v1000
    %1002 = vmatmul.f32.gmra.mxu0 %v657
    %v1003 = vpop.f32.mrf.mxu0
    %v1004 = vadd.f32 %v747, %v1003
    %1005 = vmatmul.f32.gmra.mxu0 %v658
    %v1006 = vpop.f32.mrf.mxu0
    %v1007 = vadd.f32 %v747, %v1006
    %1008 = vmatmul.f32.gmra.mxu0 %v659
    %v1009 = vpop.f32.mrf.mxu0
    %v1010 = vadd.f32 %v747, %v1009
    %1011 = vmatmul.f32.gmra.mxu0 %v660
    %v1012 = vpop.f32.mrf.mxu0
    %v1013 = vadd.f32 %v747, %v1012
    %1014 = vmatmul.f32.gmra.mxu0 %v661
    %v1015 = vpop.f32.mrf.mxu0
    %v1016 = vadd.f32 %v747, %v1015
    %1017 = vmatmul.f32.gmra.mxu0 %v662
    %v1018 = vpop.f32.mrf.mxu0
    %v1019 = vadd.f32 %v747, %v1018
    %1020 = vmatmul.f32.gmra.mxu0 %v663
    %v1021 = vpop.f32.mrf.mxu0
    %v1022 = vadd.f32 %v747, %v1021
    %1023 = vmatmul.f32.gmra.mxu0 %v664
    %v1024 = vpop.f32.mrf.mxu0
    %v1025 = vadd.f32 %v747, %v1024
    %1026 = vmatmul.f32.gmra.mxu0 %v665
    %v1027 = vpop.f32.mrf.mxu0
    %v1028 = vadd.f32 %v747, %v1027
    %1029 = vmatmul.f32.gmra.mxu0 %v666
    %v1030 = vpop.f32.mrf.mxu0
    %v1031 = vadd.f32 %v747, %v1030
    %1032 = vmatmul.f32.gmra.mxu0 %v667
    %v1033 = vpop.f32.mrf.mxu0
    %v1034 = vadd.f32 %v747, %v1033
    %1035 = vmatmul.f32.gmra.mxu0 %v668
    %v1036 = vpop.f32.mrf.mxu0
    %v1037 = vadd.f32 %v747, %v1036
    %1038 = vmatmul.f32.gmra.mxu0 %v669
    %v1039 = vpop.f32.mrf.mxu0
    %v1040 = vadd.f32 %v747, %v1039
    %1041 = vmatmul.f32.gmra.mxu0 %v670
    %v1042 = vpop.f32.mrf.mxu0
    %v1043 = vadd.f32 %v747, %v1042
    %1044 = vmatmul.f32.gmra.mxu0 %v671
    %v1045 = vpop.f32.mrf.mxu0
    %v1046 = vadd.f32 %v747, %v1045
    %1047 = vmatmul.f32.gmra.mxu0 %v672
    %v1048 = vpop.f32.mrf.mxu0
    %v1049 = vadd.f32 %v747, %v1048
    %1050 = vmatmul.f32.gmra.mxu0 %v673
    %v1051 = vpop.f32.mrf.mxu0
    %v1052 = vadd.f32 %v747, %v1051
    %1053 = vmatmul.f32.gmra.mxu0 %v674
    %v1054 = vpop.f32.mrf.mxu0
    %v1055 = vadd.f32 %v747, %v1054
    %1056 = vmatmul.f32.gmra.mxu0 %v675
    %v1057 = vpop.f32.mrf.mxu0
    %v1058 = vadd.f32 %v747, %v1057
    %1059 = vmatmul.f32.gmra.mxu0 %v676
    %v1060 = vpop.f32.mrf.mxu0
    %v1061 = vadd.f32 %v747, %v1060
    %1062 = vmatmul.f32.gmra.mxu0 %v677
    %v1063 = vpop.f32.mrf.mxu0
    %v1064 = vadd.f32 %v747, %v1063
    %1065 = vmatmul.f32.gmra.mxu0 %v678
    %v1066 = vpop.f32.mrf.mxu0
    %v1067 = vadd.f32 %v747, %v1066
    %1068 = vmatmul.f32.gmra.mxu0 %v679
    %v1069 = vpop.f32.mrf.mxu0
    %v1070 = vadd.f32 %v747, %v1069
    %1071 = vmatmul.f32.gmra.mxu0 %v680
    %v1072 = vpop.f32.mrf.mxu0
    %v1073 = vadd.f32 %v747, %v1072
    %1074 = vmatmul.f32.gmra.mxu0 %v681
    %v1075 = vpop.f32.mrf.mxu0
    %v1076 = vadd.f32 %v747, %v1075
    %1077 = vmatmul.f32.gmra.mxu0 %v682
    %v1078 = vpop.f32.mrf.mxu0
    %v1079 = vadd.f32 %v747, %v1078
    %1080 = vmatmul.f32.gmra.mxu0 %v683
    %v1081 = vpop.f32.mrf.mxu0
    %v1082 = vadd.f32 %v747, %v1081
    %1083 = vmatmul.f32.gmra.mxu0 %v684
    %v1084 = vpop.f32.mrf.mxu0
    %v1085 = vadd.f32 %v747, %v1084
    %1086 = vmatmul.f32.gmra.mxu0 %v685
    %v1087 = vpop.f32.mrf.mxu0
    %v1088 = vadd.f32 %v747, %v1087
    %1089 = vmatmul.f32.gmra.mxu0 %v686
    %v1090 = vpop.f32.mrf.mxu0
    %v1091 = vadd.f32 %v747, %v1090
    %1092 = vmatmul.f32.gmra.mxu0 %v687
    %v1093 = vpop.f32.mrf.mxu0
    %v1094 = vadd.f32 %v747, %v1093
    %1095 = vmatmul.f32.gmra.mxu0 %v688
    %v1096 = vpop.f32.mrf.mxu0
    %v1097 = vadd.f32 %v747, %v1096
    %1098 = vmatmul.f32.gmra.mxu0 %v689
    %v1099 = vpop.f32.mrf.mxu0
    %v1100 = vadd.f32 %v747, %v1099
    %1101 = vmatmul.f32.gmra.mxu0 %v690
    %v1102 = vpop.f32.mrf.mxu0
    %v1103 = vadd.f32 %v747, %v1102
    %1104 = vmatmul.f32.gmra.mxu0 %v691
    %v1105 = vpop.f32.mrf.mxu0
    %v1106 = vadd.f32 %v747, %v1105
    %1107 = vmatmul.f32.gmra.mxu0 %v692
    %v1108 = vpop.f32.mrf.mxu0
    %v1109 = vadd.f32 %v747, %v1108
    %1110 = vmatmul.f32.gmra.mxu0 %v693
    %v1111 = vpop.f32.mrf.mxu0
    %v1112 = vadd.f32 %v747, %v1111
    %1113 = vmatmul.f32.gmra.mxu0 %v694
    %v1114 = vpop.f32.mrf.mxu0
    %v1115 = vadd.f32 %v747, %v1114
    %1116 = vmatmul.f32.gmra.mxu0 %v695
    %v1117 = vpop.f32.mrf.mxu0
    %v1118 = vadd.f32 %v747, %v1117
    %1119 = vmatmul.f32.gmra.mxu0 %v696
    %v1120 = vpop.f32.mrf.mxu0
    %v1121 = vadd.f32 %v747, %v1120
    %1122 = vmatmul.f32.gmra.mxu0 %v697
    %v1123 = vpop.f32.mrf.mxu0
    %v1124 = vadd.f32 %v747, %v1123
    %1125 = vmatmul.f32.gmra.mxu0 %v698
    %v1126 = vpop.f32.mrf.mxu0
    %v1127 = vadd.f32 %v747, %v1126
    %1128 = vmatmul.f32.gmra.mxu0 %v699
    %v1129 = vpop.f32.mrf.mxu0
    %v1130 = vadd.f32 %v747, %v1129
    %1131 = vmatmul.f32.gmra.mxu0 %v700
    %v1132 = vpop.f32.mrf.mxu0
    %v1133 = vadd.f32 %v747, %v1132
    %1134 = vmatmul.f32.gmra.mxu0 %v701
    %v1135 = vpop.f32.mrf.mxu0
    %v1136 = vadd.f32 %v747, %v1135
    %1137 = vmatmul.f32.gmra.mxu0 %v702
    %v1138 = vpop.f32.mrf.mxu0
    %v1139 = vadd.f32 %v747, %v1138
    %1140 = vmatmul.f32.gmra.mxu0 %v703
    %v1141 = vpop.f32.mrf.mxu0
    %v1142 = vadd.f32 %v747, %v1141
    %1143 = vmatmul.f32.gmra.mxu0 %v704
    %v1144 = vpop.f32.mrf.mxu0
    %v1145 = vadd.f32 %v747, %v1144
    %1146 = vmatmul.f32.gmra.mxu0 %v705
    %v1147 = vpop.f32.mrf.mxu0
    %v1148 = vadd.f32 %v747, %v1147
    %1149 = vmatmul.f32.gmra.mxu0 %v706
    %v1150 = vpop.f32.mrf.mxu0
    %v1151 = vadd.f32 %v747, %v1150
    %1152 = vmatmul.f32.gmra.mxu0 %v707
    %v1153 = vpop.f32.mrf.mxu0
    %v1154 = vadd.f32 %v747, %v1153
    %1155 = vmatmul.f32.gmra.mxu0 %v708
    %v1156 = vpop.f32.mrf.mxu0
    %v1157 = vadd.f32 %v747, %v1156
    %1158 = vmatmul.f32.gmra.mxu0 %v709
    %v1159 = vpop.f32.mrf.mxu0
    %v1160 = vadd.f32 %v747, %v1159
    %1161 = vmatmul.f32.gmra.mxu0 %v710
    %v1162 = vpop.f32.mrf.mxu0
    %v1163 = vadd.f32 %v747, %v1162
    %1164 = vmatmul.f32.gmra.mxu0 %v711
    %v1165 = vpop.f32.mrf.mxu0
    %v1166 = vadd.f32 %v747, %v1165
    %1167 = vdwg.mxu0
    %v1168 = vld [vmem:[#allocation2] sm:$0xff]
    %v1169 = vld [vmem:[#allocation2 + $0x8] sm:$0xff]
    %v1170 = vld [vmem:[#allocation2 + $0x10] sm:$0xff]
    %v1171 = vld [vmem:[#allocation2 + $0x18] sm:$0xff]
    %v1172 = vld [vmem:[#allocation2 + $0x20] sm:$0xff]
    %v1173 = vld [vmem:[#allocation2 + $0x28] sm:$0xff]
    %v1174 = vld [vmem:[#allocation2 + $0x30] sm:$0xff]
    %v1175 = vld [vmem:[#allocation2 + $0x38] sm:$0xff]
    %v1176 = vld [vmem:[#allocation2 + $0x40] sm:$0xff]
    %v1177 = vld [vmem:[#allocation2 + $0x48] sm:$0xff]
    %v1178 = vld [vmem:[#allocation2 + $0x50] sm:$0xff]
    %v1179 = vld [vmem:[#allocation2 + $0x58] sm:$0xff]
    %v1180 = vld [vmem:[#allocation2 + $0x60] sm:$0xff]
    %v1181 = vld [vmem:[#allocation2 + $0x68] sm:$0xff]
    %v1182 = vld [vmem:[#allocation2 + $0x70] sm:$0xff]
    %v1183 = vld [vmem:[#allocation2 + $0x78] sm:$0xff]
    %v1184 = vld [vmem:[#allocation2 + $0x80] sm:$0xff]
    %v1185 = vld [vmem:[#allocation2 + $0x88] sm:$0xff]
    %v1186 = vld [vmem:[#allocation2 + $0x90] sm:$0xff]
    %v1187 = vld [vmem:[#allocation2 + $0x98] sm:$0xff]
    %v1188 = vld [vmem:[#allocation2 + $0xa0] sm:$0xff]
    %v1189 = vld [vmem:[#allocation2 + $0xa8] sm:$0xff]
    %v1190 = vld [vmem:[#allocation2 + $0xb0] sm:$0xff]
    %v1191 = vld [vmem:[#allocation2 + $0xb8] sm:$0xff]
    %v1192 = vld [vmem:[#allocation2 + $0xc0] sm:$0xff]
    %v1193 = vld [vmem:[#allocation2 + $0xc8] sm:$0xff]
    %v1194 = vld [vmem:[#allocation2 + $0xd0] sm:$0xff]
    %v1195 = vld [vmem:[#allocation2 + $0xd8] sm:$0xff]
    %v1196 = vld [vmem:[#allocation2 + $0xe0] sm:$0xff]
    %v1197 = vld [vmem:[#allocation2 + $0xe8] sm:$0xff]
    %v1198 = vld [vmem:[#allocation2 + $0xf0] sm:$0xff]
    %v1199 = vld [vmem:[#allocation2 + $0xf8] sm:$0xff]
    %v1200 = vld [vmem:[#allocation2 + $0x100] sm:$0xff]
    %v1201 = vld [vmem:[#allocation2 + $0x108] sm:$0xff]
    %v1202 = vld [vmem:[#allocation2 + $0x110] sm:$0xff]
    %v1203 = vld [vmem:[#allocation2 + $0x118] sm:$0xff]
    %v1204 = vld [vmem:[#allocation2 + $0x120] sm:$0xff]
    %v1205 = vld [vmem:[#allocation2 + $0x128] sm:$0xff]
    %v1206 = vld [vmem:[#allocation2 + $0x130] sm:$0xff]
    %v1207 = vld [vmem:[#allocation2 + $0x138] sm:$0xff]
    %v1208 = vld [vmem:[#allocation2 + $0x140] sm:$0xff]
    %v1209 = vld [vmem:[#allocation2 + $0x148] sm:$0xff]
    %v1210 = vld [vmem:[#allocation2 + $0x150] sm:$0xff]
    %v1211 = vld [vmem:[#allocation2 + $0x158] sm:$0xff]
    %v1212 = vld [vmem:[#allocation2 + $0x160] sm:$0xff]
    %v1213 = vld [vmem:[#allocation2 + $0x168] sm:$0xff]
    %v1214 = vld [vmem:[#allocation2 + $0x170] sm:$0xff]
    %v1215 = vld [vmem:[#allocation2 + $0x178] sm:$0xff]
    %v1216 = vld [vmem:[#allocation2 + $0x180] sm:$0xff]
    %v1217 = vld [vmem:[#allocation2 + $0x188] sm:$0xff]
    %v1218 = vld [vmem:[#allocation2 + $0x190] sm:$0xff]
    %v1219 = vld [vmem:[#allocation2 + $0x198] sm:$0xff]
    %v1220 = vld [vmem:[#allocation2 + $0x1a0] sm:$0xff]
    %v1221 = vld [vmem:[#allocation2 + $0x1a8] sm:$0xff]
    %v1222 = vld [vmem:[#allocation2 + $0x1b0] sm:$0xff]
    %v1223 = vld [vmem:[#allocation2 + $0x1b8] sm:$0xff]
    %v1224 = vld [vmem:[#allocation2 + $0x1c0] sm:$0xff]
    %v1225 = vld [vmem:[#allocation2 + $0x1c8] sm:$0xff]
    %v1226 = vld [vmem:[#allocation2 + $0x1d0] sm:$0xff]
    %v1227 = vld [vmem:[#allocation2 + $0x1d8] sm:$0xff]
    %v1228 = vld [vmem:[#allocation2 + $0x1e0] sm:$0xff]
    %v1229 = vld [vmem:[#allocation2 + $0x1e8] sm:$0xff]
    %v1230 = vld [vmem:[#allocation2 + $0x1f0] sm:$0xff]
    %v1231 = vld [vmem:[#allocation2 + $0x1f8] sm:$0xff]
    %v1232 = vld [vmem:[#allocation2 + $0x200] sm:$0xff]
    %v1233 = vld [vmem:[#allocation2 + $0x208] sm:$0xff]
    %v1234 = vld [vmem:[#allocation2 + $0x210] sm:$0xff]
    %v1235 = vld [vmem:[#allocation2 + $0x218] sm:$0xff]
    %v1236 = vld [vmem:[#allocation2 + $0x220] sm:$0xff]
    %v1237 = vld [vmem:[#allocation2 + $0x228] sm:$0xff]
    %v1238 = vld [vmem:[#allocation2 + $0x230] sm:$0xff]
    %v1239 = vld [vmem:[#allocation2 + $0x238] sm:$0xff]
    %v1240 = vld [vmem:[#allocation2 + $0x240] sm:$0xff]
    %v1241 = vld [vmem:[#allocation2 + $0x248] sm:$0xff]
    %v1242 = vld [vmem:[#allocation2 + $0x250] sm:$0xff]
    %v1243 = vld [vmem:[#allocation2 + $0x258] sm:$0xff]
    %v1244 = vld [vmem:[#allocation2 + $0x260] sm:$0xff]
    %v1245 = vld [vmem:[#allocation2 + $0x268] sm:$0xff]
    %v1246 = vld [vmem:[#allocation2 + $0x270] sm:$0xff]
    %v1247 = vld [vmem:[#allocation2 + $0x278] sm:$0xff]
    %v1248 = vld [vmem:[#allocation2 + $0x280] sm:$0xff]
    %v1249 = vld [vmem:[#allocation2 + $0x288] sm:$0xff]
    %v1250 = vld [vmem:[#allocation2 + $0x290] sm:$0xff]
    %v1251 = vld [vmem:[#allocation2 + $0x298] sm:$0xff]
    %v1252 = vld [vmem:[#allocation2 + $0x2a0] sm:$0xff]
    %v1253 = vld [vmem:[#allocation2 + $0x2a8] sm:$0xff]
    %v1254 = vld [vmem:[#allocation2 + $0x2b0] sm:$0xff]
    %v1255 = vld [vmem:[#allocation2 + $0x2b8] sm:$0xff]
    %v1256 = vld [vmem:[#allocation2 + $0x2c0] sm:$0xff]
    %v1257 = vld [vmem:[#allocation2 + $0x2c8] sm:$0xff]
    %v1258 = vld [vmem:[#allocation2 + $0x2d0] sm:$0xff]
    %v1259 = vld [vmem:[#allocation2 + $0x2d8] sm:$0xff]
    %v1260 = vld [vmem:[#allocation2 + $0x2e0] sm:$0xff]
    %v1261 = vld [vmem:[#allocation2 + $0x2e8] sm:$0xff]
    %v1262 = vld [vmem:[#allocation2 + $0x2f0] sm:$0xff]
    %v1263 = vld [vmem:[#allocation2 + $0x2f8] sm:$0xff]
    %v1264 = vld [vmem:[#allocation2 + $0x300] sm:$0xff]
    %v1265 = vld [vmem:[#allocation2 + $0x308] sm:$0xff]
    %v1266 = vld [vmem:[#allocation2 + $0x310] sm:$0xff]
    %v1267 = vld [vmem:[#allocation2 + $0x318] sm:$0xff]
    %v1268 = vld [vmem:[#allocation2 + $0x320] sm:$0xff]
    %v1269 = vld [vmem:[#allocation2 + $0x328] sm:$0xff]
    %v1270 = vld [vmem:[#allocation2 + $0x330] sm:$0xff]
    %v1271 = vld [vmem:[#allocation2 + $0x338] sm:$0xff]
    %v1272 = vld [vmem:[#allocation2 + $0x340] sm:$0xff]
    %v1273 = vld [vmem:[#allocation2 + $0x348] sm:$0xff]
    %v1274 = vld [vmem:[#allocation2 + $0x350] sm:$0xff]
    %v1275 = vld [vmem:[#allocation2 + $0x358] sm:$0xff]
    %v1276 = vld [vmem:[#allocation2 + $0x360] sm:$0xff]
    %v1277 = vld [vmem:[#allocation2 + $0x368] sm:$0xff]
    %v1278 = vld [vmem:[#allocation2 + $0x370] sm:$0xff]
    %v1279 = vld [vmem:[#allocation2 + $0x378] sm:$0xff]
    %v1280 = vld [vmem:[#allocation2 + $0x380] sm:$0xff]
    %v1281 = vld [vmem:[#allocation2 + $0x388] sm:$0xff]
    %v1282 = vld [vmem:[#allocation2 + $0x390] sm:$0xff]
    %v1283 = vld [vmem:[#allocation2 + $0x398] sm:$0xff]
    %v1284 = vld [vmem:[#allocation2 + $0x3a0] sm:$0xff]
    %v1285 = vld [vmem:[#allocation2 + $0x3a8] sm:$0xff]
    %v1286 = vld [vmem:[#allocation2 + $0x3b0] sm:$0xff]
    %v1287 = vld [vmem:[#allocation2 + $0x3b8] sm:$0xff]
    %v1288 = vld [vmem:[#allocation2 + $0x3c0] sm:$0xff]
    %v1289 = vld [vmem:[#allocation2 + $0x3c8] sm:$0xff]
    %v1290 = vld [vmem:[#allocation2 + $0x3d0] sm:$0xff]
    %v1291 = vld [vmem:[#allocation2 + $0x3d8] sm:$0xff]
    %v1292 = vld [vmem:[#allocation2 + $0x3e0] sm:$0xff]
    %v1293 = vld [vmem:[#allocation2 + $0x3e8] sm:$0xff]
    %v1294 = vld [vmem:[#allocation2 + $0x3f0] sm:$0xff]
    %v1295 = vld [vmem:[#allocation2 + $0x3f8] sm:$0xff]
    %v1296 = vld [vmem:[%s6] sm:$0x3]
    %v1297 = vperm.slane %v1296, 0
    %v1298 = vperm.slane %v1296, 1
    %vm1299 = vcmp.eq.s32.totalorder %v1168, %v1297
    %vm1300 = vcmp.eq.s32.totalorder %v1169, %v1298
    %vm1301 = vcmp.eq.s32.totalorder %v1170, %v1297
    %vm1302 = vcmp.eq.s32.totalorder %v1171, %v1298
    %vm1303 = vcmp.eq.s32.totalorder %v1172, %v1297
    %vm1304 = vcmp.eq.s32.totalorder %v1173, %v1298
    %vm1305 = vcmp.eq.s32.totalorder %v1174, %v1297
    %vm1306 = vcmp.eq.s32.totalorder %v1175, %v1298
    %vm1307 = vcmp.eq.s32.totalorder %v1176, %v1297
    %vm1308 = vcmp.eq.s32.totalorder %v1177, %v1298
    %vm1309 = vcmp.eq.s32.totalorder %v1178, %v1297
    %vm1310 = vcmp.eq.s32.totalorder %v1179, %v1298
    %vm1311 = vcmp.eq.s32.totalorder %v1180, %v1297
    %vm1312 = vcmp.eq.s32.totalorder %v1181, %v1298
    %vm1313 = vcmp.eq.s32.totalorder %v1182, %v1297
    %vm1314 = vcmp.eq.s32.totalorder %v1183, %v1298
    %vm1315 = vcmp.eq.s32.totalorder %v1184, %v1297
    %vm1316 = vcmp.eq.s32.totalorder %v1185, %v1298
    %vm1317 = vcmp.eq.s32.totalorder %v1186, %v1297
    %vm1318 = vcmp.eq.s32.totalorder %v1187, %v1298
    %vm1319 = vcmp.eq.s32.totalorder %v1188, %v1297
    %vm1320 = vcmp.eq.s32.totalorder %v1189, %v1298
    %vm1321 = vcmp.eq.s32.totalorder %v1190, %v1297
    %vm1322 = vcmp.eq.s32.totalorder %v1191, %v1298
    %vm1323 = vcmp.eq.s32.totalorder %v1192, %v1297
    %vm1324 = vcmp.eq.s32.totalorder %v1193, %v1298
    %vm1325 = vcmp.eq.s32.totalorder %v1194, %v1297
    %vm1326 = vcmp.eq.s32.totalorder %v1195, %v1298
    %vm1327 = vcmp.eq.s32.totalorder %v1196, %v1297
    %vm1328 = vcmp.eq.s32.totalorder %v1197, %v1298
    %vm1329 = vcmp.eq.s32.totalorder %v1198, %v1297
    %vm1330 = vcmp.eq.s32.totalorder %v1199, %v1298
    %vm1331 = vcmp.eq.s32.totalorder %v1200, %v1297
    %vm1332 = vcmp.eq.s32.totalorder %v1201, %v1298
    %vm1333 = vcmp.eq.s32.totalorder %v1202, %v1297
    %vm1334 = vcmp.eq.s32.totalorder %v1203, %v1298
    %vm1335 = vcmp.eq.s32.totalorder %v1204, %v1297
    %vm1336 = vcmp.eq.s32.totalorder %v1205, %v1298
    %vm1337 = vcmp.eq.s32.totalorder %v1206, %v1297
    %vm1338 = vcmp.eq.s32.totalorder %v1207, %v1298
    %vm1339 = vcmp.eq.s32.totalorder %v1208, %v1297
    %vm1340 = vcmp.eq.s32.totalorder %v1209, %v1298
    %vm1341 = vcmp.eq.s32.totalorder %v1210, %v1297
    %vm1342 = vcmp.eq.s32.totalorder %v1211, %v1298
    %vm1343 = vcmp.eq.s32.totalorder %v1212, %v1297
    %vm1344 = vcmp.eq.s32.totalorder %v1213, %v1298
    %vm1345 = vcmp.eq.s32.totalorder %v1214, %v1297
    %vm1346 = vcmp.eq.s32.totalorder %v1215, %v1298
    %vm1347 = vcmp.eq.s32.totalorder %v1216, %v1297
    %vm1348 = vcmp.eq.s32.totalorder %v1217, %v1298
    %vm1349 = vcmp.eq.s32.totalorder %v1218, %v1297
    %vm1350 = vcmp.eq.s32.totalorder %v1219, %v1298
    %vm1351 = vcmp.eq.s32.totalorder %v1220, %v1297
    %vm1352 = vcmp.eq.s32.totalorder %v1221, %v1298
    %vm1353 = vcmp.eq.s32.totalorder %v1222, %v1297
    %vm1354 = vcmp.eq.s32.totalorder %v1223, %v1298
    %vm1355 = vcmp.eq.s32.totalorder %v1224, %v1297
    %vm1356 = vcmp.eq.s32.totalorder %v1225, %v1298
    %vm1357 = vcmp.eq.s32.totalorder %v1226, %v1297
    %vm1358 = vcmp.eq.s32.totalorder %v1227, %v1298
    %vm1359 = vcmp.eq.s32.totalorder %v1228, %v1297
    %vm1360 = vcmp.eq.s32.totalorder %v1229, %v1298
    %vm1361 = vcmp.eq.s32.totalorder %v1230, %v1297
    %vm1362 = vcmp.eq.s32.totalorder %v1231, %v1298
    %vm1363 = vcmp.eq.s32.totalorder %v1232, %v1297
    %vm1364 = vcmp.eq.s32.totalorder %v1233, %v1298
    %vm1365 = vcmp.eq.s32.totalorder %v1234, %v1297
    %vm1366 = vcmp.eq.s32.totalorder %v1235, %v1298
    %vm1367 = vcmp.eq.s32.totalorder %v1236, %v1297
    %vm1368 = vcmp.eq.s32.totalorder %v1237, %v1298
    %vm1369 = vcmp.eq.s32.totalorder %v1238, %v1297
    %vm1370 = vcmp.eq.s32.totalorder %v1239, %v1298
    %vm1371 = vcmp.eq.s32.totalorder %v1240, %v1297
    %vm1372 = vcmp.eq.s32.totalorder %v1241, %v1298
    %vm1373 = vcmp.eq.s32.totalorder %v1242, %v1297
    %vm1374 = vcmp.eq.s32.totalorder %v1243, %v1298
    %vm1375 = vcmp.eq.s32.totalorder %v1244, %v1297
    %vm1376 = vcmp.eq.s32.totalorder %v1245, %v1298
    %vm1377 = vcmp.eq.s32.totalorder %v1246, %v1297
    %vm1378 = vcmp.eq.s32.totalorder %v1247, %v1298
    %vm1379 = vcmp.eq.s32.totalorder %v1248, %v1297
    %vm1380 = vcmp.eq.s32.totalorder %v1249, %v1298
    %vm1381 = vcmp.eq.s32.totalorder %v1250, %v1297
    %vm1382 = vcmp.eq.s32.totalorder %v1251, %v1298
    %vm1383 = vcmp.eq.s32.totalorder %v1252, %v1297
    %vm1384 = vcmp.eq.s32.totalorder %v1253, %v1298
    %vm1385 = vcmp.eq.s32.totalorder %v1254, %v1297
    %vm1386 = vcmp.eq.s32.totalorder %v1255, %v1298
    %vm1387 = vcmp.eq.s32.totalorder %v1256, %v1297
    %vm1388 = vcmp.eq.s32.totalorder %v1257, %v1298
    %vm1389 = vcmp.eq.s32.totalorder %v1258, %v1297
    %vm1390 = vcmp.eq.s32.totalorder %v1259, %v1298
    %vm1391 = vcmp.eq.s32.totalorder %v1260, %v1297
    %vm1392 = vcmp.eq.s32.totalorder %v1261, %v1298
    %vm1393 = vcmp.eq.s32.totalorder %v1262, %v1297
    %vm1394 = vcmp.eq.s32.totalorder %v1263, %v1298
    %vm1395 = vcmp.eq.s32.totalorder %v1264, %v1297
    %vm1396 = vcmp.eq.s32.totalorder %v1265, %v1298
    %vm1397 = vcmp.eq.s32.totalorder %v1266, %v1297
    %vm1398 = vcmp.eq.s32.totalorder %v1267, %v1298
    %vm1399 = vcmp.eq.s32.totalorder %v1268, %v1297
    %vm1400 = vcmp.eq.s32.totalorder %v1269, %v1298
    %vm1401 = vcmp.eq.s32.totalorder %v1270, %v1297
    %vm1402 = vcmp.eq.s32.totalorder %v1271, %v1298
    %vm1403 = vcmp.eq.s32.totalorder %v1272, %v1297
    %vm1404 = vcmp.eq.s32.totalorder %v1273, %v1298
    %vm1405 = vcmp.eq.s32.totalorder %v1274, %v1297
    %vm1406 = vcmp.eq.s32.totalorder %v1275, %v1298
    %vm1407 = vcmp.eq.s32.totalorder %v1276, %v1297
    %vm1408 = vcmp.eq.s32.totalorder %v1277, %v1298
    %vm1409 = vcmp.eq.s32.totalorder %v1278, %v1297
    %vm1410 = vcmp.eq.s32.totalorder %v1279, %v1298
    %vm1411 = vcmp.eq.s32.totalorder %v1280, %v1297
    %vm1412 = vcmp.eq.s32.totalorder %v1281, %v1298
    %vm1413 = vcmp.eq.s32.totalorder %v1282, %v1297
    %vm1414 = vcmp.eq.s32.totalorder %v1283, %v1298
    %vm1415 = vcmp.eq.s32.totalorder %v1284, %v1297
    %vm1416 = vcmp.eq.s32.totalorder %v1285, %v1298
    %vm1417 = vcmp.eq.s32.totalorder %v1286, %v1297
    %vm1418 = vcmp.eq.s32.totalorder %v1287, %v1298
    %vm1419 = vcmp.eq.s32.totalorder %v1288, %v1297
    %vm1420 = vcmp.eq.s32.totalorder %v1289, %v1298
    %vm1421 = vcmp.eq.s32.totalorder %v1290, %v1297
    %vm1422 = vcmp.eq.s32.totalorder %v1291, %v1298
    %vm1423 = vcmp.eq.s32.totalorder %v1292, %v1297
    %vm1424 = vcmp.eq.s32.totalorder %v1293, %v1298
    %vm1425 = vcmp.eq.s32.totalorder %v1294, %v1297
    %vm1426 = vcmp.eq.s32.totalorder %v1295, %v1298
    %v1427 = vsel %vm1299, %v768, 0.0
    %v1428 = vsel %vm1300, %v977, 0.0
    %v1429 = vsel %vm1301, %v771, 0.0
    %v1430 = vsel %vm1302, %v980, 0.0
    %v1431 = vsel %vm1303, %v774, 0.0
    %v1432 = vsel %vm1304, %v983, 0.0
    %v1433 = vsel %vm1305, %v777, 0.0
    %v1434 = vsel %vm1306, %v986, 0.0
    %v1435 = vsel %vm1307, %v780, 0.0
    %v1436 = vsel %vm1308, %v989, 0.0
    %v1437 = vsel %vm1309, %v783, 0.0
    %v1438 = vsel %vm1310, %v992, 0.0
    %v1439 = vsel %vm1311, %v786, 0.0
    %v1440 = vsel %vm1312, %v995, 0.0
    %v1441 = vsel %vm1313, %v789, 0.0
    %v1442 = vsel %vm1314, %v998, 0.0
    %v1443 = vsel %vm1315, %v792, 0.0
    %v1444 = vsel %vm1316, %v1001, 0.0
    %v1445 = vsel %vm1317, %v795, 0.0
    %v1446 = vsel %vm1318, %v1004, 0.0
    %v1447 = vsel %vm1319, %v798, 0.0
    %v1448 = vsel %vm1320, %v1007, 0.0
    %v1449 = vsel %vm1321, %v801, 0.0
    %v1450 = vsel %vm1322, %v1010, 0.0
    %v1451 = vsel %vm1323, %v804, 0.0
    %v1452 = vsel %vm1324, %v1013, 0.0
    %v1453 = vsel %vm1325, %v807, 0.0
    %v1454 = vsel %vm1326, %v1016, 0.0
    %v1455 = vsel %vm1327, %v810, 0.0
    %v1456 = vsel %vm1328, %v1019, 0.0
    %v1457 = vsel %vm1329, %v813, 0.0
    %v1458 = vsel %vm1330, %v1022, 0.0
    %v1459 = vsel %vm1331, %v816, 0.0
    %v1460 = vsel %vm1332, %v1025, 0.0
    %v1461 = vsel %vm1333, %v819, 0.0
    %v1462 = vsel %vm1334, %v1028, 0.0
    %v1463 = vsel %vm1335, %v822, 0.0
    %v1464 = vsel %vm1336, %v1031, 0.0
    %v1465 = vsel %vm1337, %v825, 0.0
    %v1466 = vsel %vm1338, %v1034, 0.0
    %v1467 = vsel %vm1339, %v828, 0.0
    %v1468 = vsel %vm1340, %v1037, 0.0
    %v1469 = vsel %vm1341, %v831, 0.0
    %v1470 = vsel %vm1342, %v1040, 0.0
    %v1471 = vsel %vm1343, %v834, 0.0
    %v1472 = vsel %vm1344, %v1043, 0.0
    %v1473 = vsel %vm1345, %v837, 0.0
    %v1474 = vsel %vm1346, %v1046, 0.0
    %v1475 = vsel %vm1347, %v840, 0.0
    %v1476 = vsel %vm1348, %v1049, 0.0
    %v1477 = vsel %vm1349, %v843, 0.0
    %v1478 = vsel %vm1350, %v1052, 0.0
    %v1479 = vsel %vm1351, %v846, 0.0
    %v1480 = vsel %vm1352, %v1055, 0.0
    %v1481 = vsel %vm1353, %v849, 0.0
    %v1482 = vsel %vm1354, %v1058, 0.0
    %v1483 = vsel %vm1355, %v852, 0.0
    %v1484 = vsel %vm1356, %v1061, 0.0
    %v1485 = vsel %vm1357, %v855, 0.0
    %v1486 = vsel %vm1358, %v1064, 0.0
    %v1487 = vsel %vm1359, %v858, 0.0
    %v1488 = vsel %vm1360, %v1067, 0.0
    %v1489 = vsel %vm1361, %v861, 0.0
    %v1490 = vsel %vm1362, %v1070, 0.0
    %v1491 = vsel %vm1363, %v864, 0.0
    %v1492 = vsel %vm1364, %v1073, 0.0
    %v1493 = vsel %vm1365, %v867, 0.0
    %v1494 = vsel %vm1366, %v1076, 0.0
    %v1495 = vsel %vm1367, %v870, 0.0
    %v1496 = vsel %vm1368, %v1079, 0.0
    %v1497 = vsel %vm1369, %v873, 0.0
    %v1498 = vsel %vm1370, %v1082, 0.0
    %v1499 = vsel %vm1371, %v876, 0.0
    %v1500 = vsel %vm1372, %v1085, 0.0
    %v1501 = vsel %vm1373, %v879, 0.0
    %v1502 = vsel %vm1374, %v1088, 0.0
    %v1503 = vsel %vm1375, %v882, 0.0
    %v1504 = vsel %vm1376, %v1091, 0.0
    %v1505 = vsel %vm1377, %v885, 0.0
    %v1506 = vsel %vm1378, %v1094, 0.0
    %v1507 = vsel %vm1379, %v888, 0.0
    %v1508 = vsel %vm1380, %v1097, 0.0
    %v1509 = vsel %vm1381, %v891, 0.0
    %v1510 = vsel %vm1382, %v1100, 0.0
    %v1511 = vsel %vm1383, %v894, 0.0
    %v1512 = vsel %vm1384, %v1103, 0.0
    %v1513 = vsel %vm1385, %v897, 0.0
    %v1514 = vsel %vm1386, %v1106, 0.0
    %v1515 = vsel %vm1387, %v900, 0.0
    %v1516 = vsel %vm1388, %v1109, 0.0
    %v1517 = vsel %vm1389, %v903, 0.0
    %v1518 = vsel %vm1390, %v1112, 0.0
    %v1519 = vsel %vm1391, %v906, 0.0
    %v1520 = vsel %vm1392, %v1115, 0.0
    %v1521 = vsel %vm1393, %v909, 0.0
    %v1522 = vsel %vm1394, %v1118, 0.0
    %v1523 = vsel %vm1395, %v912, 0.0
    %v1524 = vsel %vm1396, %v1121, 0.0
    %v1525 = vsel %vm1397, %v915, 0.0
    %v1526 = vsel %vm1398, %v1124, 0.0
    %v1527 = vsel %vm1399, %v918, 0.0
    %v1528 = vsel %vm1400, %v1127, 0.0
    %v1529 = vsel %vm1401, %v921, 0.0
    %v1530 = vsel %vm1402, %v1130, 0.0
    %v1531 = vsel %vm1403, %v924, 0.0
    %v1532 = vsel %vm1404, %v1133, 0.0
    %v1533 = vsel %vm1405, %v927, 0.0
    %v1534 = vsel %vm1406, %v1136, 0.0
    %v1535 = vsel %vm1407, %v930, 0.0
    %v1536 = vsel %vm1408, %v1139, 0.0
    %v1537 = vsel %vm1409, %v933, 0.0
    %v1538 = vsel %vm1410, %v1142, 0.0
    %v1539 = vsel %vm1411, %v936, 0.0
    %v1540 = vsel %vm1412, %v1145, 0.0
    %v1541 = vsel %vm1413, %v939, 0.0
    %v1542 = vsel %vm1414, %v1148, 0.0
    %v1543 = vsel %vm1415, %v942, 0.0
    %v1544 = vsel %vm1416, %v1151, 0.0
    %v1545 = vsel %vm1417, %v945, 0.0
    %v1546 = vsel %vm1418, %v1154, 0.0
    %v1547 = vsel %vm1419, %v948, 0.0
    %v1548 = vsel %vm1420, %v1157, 0.0
    %v1549 = vsel %vm1421, %v951, 0.0
    %v1550 = vsel %vm1422, %v1160, 0.0
    %v1551 = vsel %vm1423, %v954, 0.0
    %v1552 = vsel %vm1424, %v1163, 0.0
    %v1553 = vsel %vm1425, %v957, 0.0
    %v1554 = vsel %vm1426, %v1166, 0.0
    %v1555 = vld [vmem:[%s7] sm:$0xff]
    %v1556 = vld [vmem:[%s7 + $0x8] sm:$0xff]
    %v1557 = vld [vmem:[%s7 + $0x10] sm:$0xff]
    %v1558 = vld [vmem:[%s7 + $0x18] sm:$0xff]
    %v1559 = vld [vmem:[%s7 + $0x20] sm:$0xff]
    %v1560 = vld [vmem:[%s7 + $0x28] sm:$0xff]
    %v1561 = vld [vmem:[%s7 + $0x30] sm:$0xff]
    %v1562 = vld [vmem:[%s7 + $0x38] sm:$0xff]
    %v1563 = vld [vmem:[%s7 + $0x40] sm:$0xff]
    %v1564 = vld [vmem:[%s7 + $0x48] sm:$0xff]
    %v1565 = vld [vmem:[%s7 + $0x50] sm:$0xff]
    %v1566 = vld [vmem:[%s7 + $0x58] sm:$0xff]
    %v1567 = vld [vmem:[%s7 + $0x60] sm:$0xff]
    %v1568 = vld [vmem:[%s7 + $0x68] sm:$0xff]
    %v1569 = vld [vmem:[%s7 + $0x70] sm:$0xff]
    %v1570 = vld [vmem:[%s7 + $0x78] sm:$0xff]
    %v1571 = vld [vmem:[%s7 + $0x80] sm:$0xff]
    %v1572 = vld [vmem:[%s7 + $0x88] sm:$0xff]
    %v1573 = vld [vmem:[%s7 + $0x90] sm:$0xff]
    %v1574 = vld [vmem:[%s7 + $0x98] sm:$0xff]
    %v1575 = vld [vmem:[%s7 + $0xa0] sm:$0xff]
    %v1576 = vld [vmem:[%s7 + $0xa8] sm:$0xff]
    %v1577 = vld [vmem:[%s7 + $0xb0] sm:$0xff]
    %v1578 = vld [vmem:[%s7 + $0xb8] sm:$0xff]
    %v1579 = vld [vmem:[%s7 + $0xc0] sm:$0xff]
    %v1580 = vld [vmem:[%s7 + $0xc8] sm:$0xff]
    %v1581 = vld [vmem:[%s7 + $0xd0] sm:$0xff]
    %v1582 = vld [vmem:[%s7 + $0xd8] sm:$0xff]
    %v1583 = vld [vmem:[%s7 + $0xe0] sm:$0xff]
    %v1584 = vld [vmem:[%s7 + $0xe8] sm:$0xff]
    %v1585 = vld [vmem:[%s7 + $0xf0] sm:$0xff]
    %v1586 = vld [vmem:[%s7 + $0xf8] sm:$0xff]
    %1587 = vmatpush.msra.mxu0 %v1570
    %1588 = vmatpush.msra.mxu0 %v1569
    %1589 = vmatpush.msra.mxu0 %v1568
    %1590 = vmatpush.msra.mxu0 %v1567
    %1591 = vmatpush.msra.mxu0 %v1566
    %1592 = vmatpush.msra.mxu0 %v1565
    %1593 = vmatpush.msra.mxu0 %v1564
    %1594 = vmatpush.msra.mxu0 %v1563
    %1595 = vmatpush.msra.mxu0 %v1562
    %1596 = vmatpush.msra.mxu0 %v1561
    %1597 = vmatpush.msra.mxu0 %v1560
    %1598 = vmatpush.msra.mxu0 %v1559
    %1599 = vmatpush.msra.mxu0 %v1558
    %1600 = vmatpush.msra.mxu0 %v1557
    %1601 = vmatpush.msra.mxu0 %v1556
    %1602 = vmatpush.msra.mxu0 %v1555
    %1603 = vmatmul.f32.gmra.mxu0 %v1427
    %v1604 = vpop.f32.mrf.mxu0
    %v1605 = vadd.f32 0.0, %v1604
    %1606 = vmatmul.f32.gmra.mxu0 %v1429
    %v1607 = vpop.f32.mrf.mxu0
    %v1608 = vadd.f32 0.0, %v1607
    %1609 = vmatmul.f32.gmra.mxu0 %v1431
    %v1610 = vpop.f32.mrf.mxu0
    %v1611 = vadd.f32 0.0, %v1610
    %1612 = vmatmul.f32.gmra.mxu0 %v1433
    %v1613 = vpop.f32.mrf.mxu0
    %v1614 = vadd.f32 0.0, %v1613
    %1615 = vmatmul.f32.gmra.mxu0 %v1435
    %v1616 = vpop.f32.mrf.mxu0
    %v1617 = vadd.f32 0.0, %v1616
    %1618 = vmatmul.f32.gmra.mxu0 %v1437
    %v1619 = vpop.f32.mrf.mxu0
    %v1620 = vadd.f32 0.0, %v1619
    %1621 = vmatmul.f32.gmra.mxu0 %v1439
    %v1622 = vpop.f32.mrf.mxu0
    %v1623 = vadd.f32 0.0, %v1622
    %1624 = vmatmul.f32.gmra.mxu0 %v1441
    %v1625 = vpop.f32.mrf.mxu0
    %v1626 = vadd.f32 0.0, %v1625
    %1627 = vmatmul.f32.gmra.mxu0 %v1443
    %v1628 = vpop.f32.mrf.mxu0
    %v1629 = vadd.f32 0.0, %v1628
    %1630 = vmatmul.f32.gmra.mxu0 %v1445
    %v1631 = vpop.f32.mrf.mxu0
    %v1632 = vadd.f32 0.0, %v1631
    %1633 = vmatmul.f32.gmra.mxu0 %v1447
    %v1634 = vpop.f32.mrf.mxu0
    %v1635 = vadd.f32 0.0, %v1634
    %1636 = vmatmul.f32.gmra.mxu0 %v1449
    %v1637 = vpop.f32.mrf.mxu0
    %v1638 = vadd.f32 0.0, %v1637
    %1639 = vmatmul.f32.gmra.mxu0 %v1451
    %v1640 = vpop.f32.mrf.mxu0
    %v1641 = vadd.f32 0.0, %v1640
    %1642 = vmatmul.f32.gmra.mxu0 %v1453
    %v1643 = vpop.f32.mrf.mxu0
    %v1644 = vadd.f32 0.0, %v1643
    %1645 = vmatmul.f32.gmra.mxu0 %v1455
    %v1646 = vpop.f32.mrf.mxu0
    %v1647 = vadd.f32 0.0, %v1646
    %1648 = vmatmul.f32.gmra.mxu0 %v1457
    %v1649 = vpop.f32.mrf.mxu0
    %v1650 = vadd.f32 0.0, %v1649
    %1651 = vmatmul.f32.gmra.mxu0 %v1459
    %v1652 = vpop.f32.mrf.mxu0
    %v1653 = vadd.f32 0.0, %v1652
    %1654 = vmatmul.f32.gmra.mxu0 %v1461
    %v1655 = vpop.f32.mrf.mxu0
    %v1656 = vadd.f32 0.0, %v1655
    %1657 = vmatmul.f32.gmra.mxu0 %v1463
    %v1658 = vpop.f32.mrf.mxu0
    %v1659 = vadd.f32 0.0, %v1658
    %1660 = vmatmul.f32.gmra.mxu0 %v1465
    %v1661 = vpop.f32.mrf.mxu0
    %v1662 = vadd.f32 0.0, %v1661
    %1663 = vmatmul.f32.gmra.mxu0 %v1467
    %v1664 = vpop.f32.mrf.mxu0
    %v1665 = vadd.f32 0.0, %v1664
    %1666 = vmatmul.f32.gmra.mxu0 %v1469
    %v1667 = vpop.f32.mrf.mxu0
    %v1668 = vadd.f32 0.0, %v1667
    %1669 = vmatmul.f32.gmra.mxu0 %v1471
    %v1670 = vpop.f32.mrf.mxu0
    %v1671 = vadd.f32 0.0, %v1670
    %1672 = vmatmul.f32.gmra.mxu0 %v1473
    %v1673 = vpop.f32.mrf.mxu0
    %v1674 = vadd.f32 0.0, %v1673
    %1675 = vmatmul.f32.gmra.mxu0 %v1475
    %v1676 = vpop.f32.mrf.mxu0
    %v1677 = vadd.f32 0.0, %v1676
    %1678 = vmatmul.f32.gmra.mxu0 %v1477
    %v1679 = vpop.f32.mrf.mxu0
    %v1680 = vadd.f32 0.0, %v1679
    %1681 = vmatmul.f32.gmra.mxu0 %v1479
    %v1682 = vpop.f32.mrf.mxu0
    %v1683 = vadd.f32 0.0, %v1682
    %1684 = vmatmul.f32.gmra.mxu0 %v1481
    %v1685 = vpop.f32.mrf.mxu0
    %v1686 = vadd.f32 0.0, %v1685
    %1687 = vmatmul.f32.gmra.mxu0 %v1483
    %v1688 = vpop.f32.mrf.mxu0
    %v1689 = vadd.f32 0.0, %v1688
    %1690 = vmatmul.f32.gmra.mxu0 %v1485
    %v1691 = vpop.f32.mrf.mxu0
    %v1692 = vadd.f32 0.0, %v1691
    %1693 = vmatmul.f32.gmra.mxu0 %v1487
    %v1694 = vpop.f32.mrf.mxu0
    %v1695 = vadd.f32 0.0, %v1694
    %1696 = vmatmul.f32.gmra.mxu0 %v1489
    %v1697 = vpop.f32.mrf.mxu0
    %v1698 = vadd.f32 0.0, %v1697
    %1699 = vmatmul.f32.gmra.mxu0 %v1491
    %v1700 = vpop.f32.mrf.mxu0
    %v1701 = vadd.f32 0.0, %v1700
    %1702 = vmatmul.f32.gmra.mxu0 %v1493
    %v1703 = vpop.f32.mrf.mxu0
    %v1704 = vadd.f32 0.0, %v1703
    %1705 = vmatmul.f32.gmra.mxu0 %v1495
    %v1706 = vpop.f32.mrf.mxu0
    %v1707 = vadd.f32 0.0, %v1706
    %1708 = vmatmul.f32.gmra.mxu0 %v1497
    %v1709 = vpop.f32.mrf.mxu0
    %v1710 = vadd.f32 0.0, %v1709
    %1711 = vmatmul.f32.gmra.mxu0 %v1499
    %v1712 = vpop.f32.mrf.mxu0
    %v1713 = vadd.f32 0.0, %v1712
    %1714 = vmatmul.f32.gmra.mxu0 %v1501
    %v1715 = vpop.f32.mrf.mxu0
    %v1716 = vadd.f32 0.0, %v1715
    %1717 = vmatmul.f32.gmra.mxu0 %v1503
    %v1718 = vpop.f32.mrf.mxu0
    %v1719 = vadd.f32 0.0, %v1718
    %1720 = vmatmul.f32.gmra.mxu0 %v1505
    %v1721 = vpop.f32.mrf.mxu0
    %v1722 = vadd.f32 0.0, %v1721
    %1723 = vmatmul.f32.gmra.mxu0 %v1507
    %v1724 = vpop.f32.mrf.mxu0
    %v1725 = vadd.f32 0.0, %v1724
    %1726 = vmatmul.f32.gmra.mxu0 %v1509
    %v1727 = vpop.f32.mrf.mxu0
    %v1728 = vadd.f32 0.0, %v1727
    %1729 = vmatmul.f32.gmra.mxu0 %v1511
    %v1730 = vpop.f32.mrf.mxu0
    %v1731 = vadd.f32 0.0, %v1730
    %1732 = vmatmul.f32.gmra.mxu0 %v1513
    %v1733 = vpop.f32.mrf.mxu0
    %v1734 = vadd.f32 0.0, %v1733
    %1735 = vmatmul.f32.gmra.mxu0 %v1515
    %v1736 = vpop.f32.mrf.mxu0
    %v1737 = vadd.f32 0.0, %v1736
    %1738 = vmatmul.f32.gmra.mxu0 %v1517
    %v1739 = vpop.f32.mrf.mxu0
    %v1740 = vadd.f32 0.0, %v1739
    %1741 = vmatmul.f32.gmra.mxu0 %v1519
    %v1742 = vpop.f32.mrf.mxu0
    %v1743 = vadd.f32 0.0, %v1742
    %1744 = vmatmul.f32.gmra.mxu0 %v1521
    %v1745 = vpop.f32.mrf.mxu0
    %v1746 = vadd.f32 0.0, %v1745
    %1747 = vmatmul.f32.gmra.mxu0 %v1523
    %v1748 = vpop.f32.mrf.mxu0
    %v1749 = vadd.f32 0.0, %v1748
    %1750 = vmatmul.f32.gmra.mxu0 %v1525
    %v1751 = vpop.f32.mrf.mxu0
    %v1752 = vadd.f32 0.0, %v1751
    %1753 = vmatmul.f32.gmra.mxu0 %v1527
    %v1754 = vpop.f32.mrf.mxu0
    %v1755 = vadd.f32 0.0, %v1754
    %1756 = vmatmul.f32.gmra.mxu0 %v1529
    %v1757 = vpop.f32.mrf.mxu0
    %v1758 = vadd.f32 0.0, %v1757
    %1759 = vmatmul.f32.gmra.mxu0 %v1531
    %v1760 = vpop.f32.mrf.mxu0
    %v1761 = vadd.f32 0.0, %v1760
    %1762 = vmatmul.f32.gmra.mxu0 %v1533
    %v1763 = vpop.f32.mrf.mxu0
    %v1764 = vadd.f32 0.0, %v1763
    %1765 = vmatmul.f32.gmra.mxu0 %v1535
    %v1766 = vpop.f32.mrf.mxu0
    %v1767 = vadd.f32 0.0, %v1766
    %1768 = vmatmul.f32.gmra.mxu0 %v1537
    %v1769 = vpop.f32.mrf.mxu0
    %v1770 = vadd.f32 0.0, %v1769
    %1771 = vmatmul.f32.gmra.mxu0 %v1539
    %v1772 = vpop.f32.mrf.mxu0
    %v1773 = vadd.f32 0.0, %v1772
    %1774 = vmatmul.f32.gmra.mxu0 %v1541
    %v1775 = vpop.f32.mrf.mxu0
    %v1776 = vadd.f32 0.0, %v1775
    %1777 = vmatmul.f32.gmra.mxu0 %v1543
    %v1778 = vpop.f32.mrf.mxu0
    %v1779 = vadd.f32 0.0, %v1778
    %1780 = vmatmul.f32.gmra.mxu0 %v1545
    %v1781 = vpop.f32.mrf.mxu0
    %v1782 = vadd.f32 0.0, %v1781
    %1783 = vmatmul.f32.gmra.mxu0 %v1547
    %v1784 = vpop.f32.mrf.mxu0
    %v1785 = vadd.f32 0.0, %v1784
    %1786 = vmatmul.f32.gmra.mxu0 %v1549
    %v1787 = vpop.f32.mrf.mxu0
    %v1788 = vadd.f32 0.0, %v1787
    %1789 = vmatmul.f32.gmra.mxu0 %v1551
    %v1790 = vpop.f32.mrf.mxu0
    %v1791 = vadd.f32 0.0, %v1790
    %1792 = vmatmul.f32.gmra.mxu0 %v1553
    %v1793 = vpop.f32.mrf.mxu0
    %v1794 = vadd.f32 0.0, %v1793
    %1795 = vdwg.mxu0
    %1796 = vmatpush.msra.mxu0 %v1586
    %1797 = vmatpush.msra.mxu0 %v1585
    %1798 = vmatpush.msra.mxu0 %v1584
    %1799 = vmatpush.msra.mxu0 %v1583
    %1800 = vmatpush.msra.mxu0 %v1582
    %1801 = vmatpush.msra.mxu0 %v1581
    %1802 = vmatpush.msra.mxu0 %v1580
    %1803 = vmatpush.msra.mxu0 %v1579
    %1804 = vmatpush.msra.mxu0 %v1578
    %1805 = vmatpush.msra.mxu0 %v1577
    %1806 = vmatpush.msra.mxu0 %v1576
    %1807 = vmatpush.msra.mxu0 %v1575
    %1808 = vmatpush.msra.mxu0 %v1574
    %1809 = vmatpush.msra.mxu0 %v1573
    %1810 = vmatpush.msra.mxu0 %v1572
    %1811 = vmatpush.msra.mxu0 %v1571
    %1812 = vmatmul.f32.gmra.mxu0 %v1428
    %v1813 = vpop.f32.mrf.mxu0
    %v1814 = vadd.f32 %v1605, %v1813
    %1815 = vmatmul.f32.gmra.mxu0 %v1430
    %v1816 = vpop.f32.mrf.mxu0
    %v1817 = vadd.f32 %v1608, %v1816
    %1818 = vmatmul.f32.gmra.mxu0 %v1432
    %v1819 = vpop.f32.mrf.mxu0
    %v1820 = vadd.f32 %v1611, %v1819
    %1821 = vmatmul.f32.gmra.mxu0 %v1434
    %v1822 = vpop.f32.mrf.mxu0
    %v1823 = vadd.f32 %v1614, %v1822
    %1824 = vmatmul.f32.gmra.mxu0 %v1436
    %v1825 = vpop.f32.mrf.mxu0
    %v1826 = vadd.f32 %v1617, %v1825
    %1827 = vmatmul.f32.gmra.mxu0 %v1438
    %v1828 = vpop.f32.mrf.mxu0
    %v1829 = vadd.f32 %v1620, %v1828
    %1830 = vmatmul.f32.gmra.mxu0 %v1440
    %v1831 = vpop.f32.mrf.mxu0
    %v1832 = vadd.f32 %v1623, %v1831
    %1833 = vmatmul.f32.gmra.mxu0 %v1442
    %v1834 = vpop.f32.mrf.mxu0
    %v1835 = vadd.f32 %v1626, %v1834
    %1836 = vmatmul.f32.gmra.mxu0 %v1444
    %v1837 = vpop.f32.mrf.mxu0
    %v1838 = vadd.f32 %v1629, %v1837
    %1839 = vmatmul.f32.gmra.mxu0 %v1446
    %v1840 = vpop.f32.mrf.mxu0
    %v1841 = vadd.f32 %v1632, %v1840
    %1842 = vmatmul.f32.gmra.mxu0 %v1448
    %v1843 = vpop.f32.mrf.mxu0
    %v1844 = vadd.f32 %v1635, %v1843
    %1845 = vmatmul.f32.gmra.mxu0 %v1450
    %v1846 = vpop.f32.mrf.mxu0
    %v1847 = vadd.f32 %v1638, %v1846
    %1848 = vmatmul.f32.gmra.mxu0 %v1452
    %v1849 = vpop.f32.mrf.mxu0
    %v1850 = vadd.f32 %v1641, %v1849
    %1851 = vmatmul.f32.gmra.mxu0 %v1454
    %v1852 = vpop.f32.mrf.mxu0
    %v1853 = vadd.f32 %v1644, %v1852
    %1854 = vmatmul.f32.gmra.mxu0 %v1456
    %v1855 = vpop.f32.mrf.mxu0
    %v1856 = vadd.f32 %v1647, %v1855
    %1857 = vmatmul.f32.gmra.mxu0 %v1458
    %v1858 = vpop.f32.mrf.mxu0
    %v1859 = vadd.f32 %v1650, %v1858
    %1860 = vmatmul.f32.gmra.mxu0 %v1460
    %v1861 = vpop.f32.mrf.mxu0
    %v1862 = vadd.f32 %v1653, %v1861
    %1863 = vmatmul.f32.gmra.mxu0 %v1462
    %v1864 = vpop.f32.mrf.mxu0
    %v1865 = vadd.f32 %v1656, %v1864
    %1866 = vmatmul.f32.gmra.mxu0 %v1464
    %v1867 = vpop.f32.mrf.mxu0
    %v1868 = vadd.f32 %v1659, %v1867
    %1869 = vmatmul.f32.gmra.mxu0 %v1466
    %v1870 = vpop.f32.mrf.mxu0
    %v1871 = vadd.f32 %v1662, %v1870
    %1872 = vmatmul.f32.gmra.mxu0 %v1468
    %v1873 = vpop.f32.mrf.mxu0
    %v1874 = vadd.f32 %v1665, %v1873
    %1875 = vmatmul.f32.gmra.mxu0 %v1470
    %v1876 = vpop.f32.mrf.mxu0
    %v1877 = vadd.f32 %v1668, %v1876
    %1878 = vmatmul.f32.gmra.mxu0 %v1472
    %v1879 = vpop.f32.mrf.mxu0
    %v1880 = vadd.f32 %v1671, %v1879
    %1881 = vmatmul.f32.gmra.mxu0 %v1474
    %v1882 = vpop.f32.mrf.mxu0
    %v1883 = vadd.f32 %v1674, %v1882
    %1884 = vmatmul.f32.gmra.mxu0 %v1476
    %v1885 = vpop.f32.mrf.mxu0
    %v1886 = vadd.f32 %v1677, %v1885
    %1887 = vmatmul.f32.gmra.mxu0 %v1478
    %v1888 = vpop.f32.mrf.mxu0
    %v1889 = vadd.f32 %v1680, %v1888
    %1890 = vmatmul.f32.gmra.mxu0 %v1480
    %v1891 = vpop.f32.mrf.mxu0
    %v1892 = vadd.f32 %v1683, %v1891
    %1893 = vmatmul.f32.gmra.mxu0 %v1482
    %v1894 = vpop.f32.mrf.mxu0
    %v1895 = vadd.f32 %v1686, %v1894
    %1896 = vmatmul.f32.gmra.mxu0 %v1484
    %v1897 = vpop.f32.mrf.mxu0
    %v1898 = vadd.f32 %v1689, %v1897
    %1899 = vmatmul.f32.gmra.mxu0 %v1486
    %v1900 = vpop.f32.mrf.mxu0
    %v1901 = vadd.f32 %v1692, %v1900
    %1902 = vmatmul.f32.gmra.mxu0 %v1488
    %v1903 = vpop.f32.mrf.mxu0
    %v1904 = vadd.f32 %v1695, %v1903
    %1905 = vmatmul.f32.gmra.mxu0 %v1490
    %v1906 = vpop.f32.mrf.mxu0
    %v1907 = vadd.f32 %v1698, %v1906
    %1908 = vmatmul.f32.gmra.mxu0 %v1492
    %v1909 = vpop.f32.mrf.mxu0
    %v1910 = vadd.f32 %v1701, %v1909
    %1911 = vmatmul.f32.gmra.mxu0 %v1494
    %v1912 = vpop.f32.mrf.mxu0
    %v1913 = vadd.f32 %v1704, %v1912
    %1914 = vmatmul.f32.gmra.mxu0 %v1496
    %v1915 = vpop.f32.mrf.mxu0
    %v1916 = vadd.f32 %v1707, %v1915
    %1917 = vmatmul.f32.gmra.mxu0 %v1498
    %v1918 = vpop.f32.mrf.mxu0
    %v1919 = vadd.f32 %v1710, %v1918
    %1920 = vmatmul.f32.gmra.mxu0 %v1500
    %v1921 = vpop.f32.mrf.mxu0
    %v1922 = vadd.f32 %v1713, %v1921
    %1923 = vmatmul.f32.gmra.mxu0 %v1502
    %v1924 = vpop.f32.mrf.mxu0
    %v1925 = vadd.f32 %v1716, %v1924
    %1926 = vmatmul.f32.gmra.mxu0 %v1504
    %v1927 = vpop.f32.mrf.mxu0
    %v1928 = vadd.f32 %v1719, %v1927
    %1929 = vmatmul.f32.gmra.mxu0 %v1506
    %v1930 = vpop.f32.mrf.mxu0
    %v1931 = vadd.f32 %v1722, %v1930
    %1932 = vmatmul.f32.gmra.mxu0 %v1508
    %v1933 = vpop.f32.mrf.mxu0
    %v1934 = vadd.f32 %v1725, %v1933
    %1935 = vmatmul.f32.gmra.mxu0 %v1510
    %v1936 = vpop.f32.mrf.mxu0
    %v1937 = vadd.f32 %v1728, %v1936
    %1938 = vmatmul.f32.gmra.mxu0 %v1512
    %v1939 = vpop.f32.mrf.mxu0
    %v1940 = vadd.f32 %v1731, %v1939
    %1941 = vmatmul.f32.gmra.mxu0 %v1514
    %v1942 = vpop.f32.mrf.mxu0
    %v1943 = vadd.f32 %v1734, %v1942
    %1944 = vmatmul.f32.gmra.mxu0 %v1516
    %v1945 = vpop.f32.mrf.mxu0
    %v1946 = vadd.f32 %v1737, %v1945
    %1947 = vmatmul.f32.gmra.mxu0 %v1518
    %v1948 = vpop.f32.mrf.mxu0
    %v1949 = vadd.f32 %v1740, %v1948
    %1950 = vmatmul.f32.gmra.mxu0 %v1520
    %v1951 = vpop.f32.mrf.mxu0
    %v1952 = vadd.f32 %v1743, %v1951
    %1953 = vmatmul.f32.gmra.mxu0 %v1522
    %v1954 = vpop.f32.mrf.mxu0
    %v1955 = vadd.f32 %v1746, %v1954
    %1956 = vmatmul.f32.gmra.mxu0 %v1524
    %v1957 = vpop.f32.mrf.mxu0
    %v1958 = vadd.f32 %v1749, %v1957
    %1959 = vmatmul.f32.gmra.mxu0 %v1526
    %v1960 = vpop.f32.mrf.mxu0
    %v1961 = vadd.f32 %v1752, %v1960
    %1962 = vmatmul.f32.gmra.mxu0 %v1528
    %v1963 = vpop.f32.mrf.mxu0
    %v1964 = vadd.f32 %v1755, %v1963
    %1965 = vmatmul.f32.gmra.mxu0 %v1530
    %v1966 = vpop.f32.mrf.mxu0
    %v1967 = vadd.f32 %v1758, %v1966
    %1968 = vmatmul.f32.gmra.mxu0 %v1532
    %v1969 = vpop.f32.mrf.mxu0
    %v1970 = vadd.f32 %v1761, %v1969
    %1971 = vmatmul.f32.gmra.mxu0 %v1534
    %v1972 = vpop.f32.mrf.mxu0
    %v1973 = vadd.f32 %v1764, %v1972
    %1974 = vmatmul.f32.gmra.mxu0 %v1536
    %v1975 = vpop.f32.mrf.mxu0
    %v1976 = vadd.f32 %v1767, %v1975
    %1977 = vmatmul.f32.gmra.mxu0 %v1538
    %v1978 = vpop.f32.mrf.mxu0
    %v1979 = vadd.f32 %v1770, %v1978
    %1980 = vmatmul.f32.gmra.mxu0 %v1540
    %v1981 = vpop.f32.mrf.mxu0
    %v1982 = vadd.f32 %v1773, %v1981
    %1983 = vmatmul.f32.gmra.mxu0 %v1542
    %v1984 = vpop.f32.mrf.mxu0
    %v1985 = vadd.f32 %v1776, %v1984
    %1986 = vmatmul.f32.gmra.mxu0 %v1544
    %v1987 = vpop.f32.mrf.mxu0
    %v1988 = vadd.f32 %v1779, %v1987
    %1989 = vmatmul.f32.gmra.mxu0 %v1546
    %v1990 = vpop.f32.mrf.mxu0
    %v1991 = vadd.f32 %v1782, %v1990
    %1992 = vmatmul.f32.gmra.mxu0 %v1548
    %v1993 = vpop.f32.mrf.mxu0
    %v1994 = vadd.f32 %v1785, %v1993
    %1995 = vmatmul.f32.gmra.mxu0 %v1550
    %v1996 = vpop.f32.mrf.mxu0
    %v1997 = vadd.f32 %v1788, %v1996
    %1998 = vmatmul.f32.gmra.mxu0 %v1552
    %v1999 = vpop.f32.mrf.mxu0
    %v2000 = vadd.f32 %v1791, %v1999
    %2001 = vmatmul.f32.gmra.mxu0 %v1554
    %v2002 = vpop.f32.mrf.mxu0
    %v2003 = vadd.f32 %v1794, %v2002
    %2004 = vdwg.mxu0
    %vm2005 = vcmask 64512
    %2006 = vst.msk [vmem:[%s8] sm:$0xff] %vm2005, %v1814
    %2007 = vst.msk [vmem:[%s8 + $0x8] sm:$0xff] %vm2005, %v1817
    %2008 = vst.msk [vmem:[%s8 + $0x10] sm:$0xff] %vm2005, %v1820
    %2009 = vst.msk [vmem:[%s8 + $0x18] sm:$0xff] %vm2005, %v1823
    %2010 = vst.msk [vmem:[%s8 + $0x20] sm:$0xff] %vm2005, %v1826
    %2011 = vst.msk [vmem:[%s8 + $0x28] sm:$0xff] %vm2005, %v1829
    %2012 = vst.msk [vmem:[%s8 + $0x30] sm:$0xff] %vm2005, %v1832
    %2013 = vst.msk [vmem:[%s8 + $0x38] sm:$0xff] %vm2005, %v1835
    %2014 = vst.msk [vmem:[%s8 + $0x40] sm:$0xff] %vm2005, %v1838
    %2015 = vst.msk [vmem:[%s8 + $0x48] sm:$0xff] %vm2005, %v1841
    %2016 = vst.msk [vmem:[%s8 + $0x50] sm:$0xff] %vm2005, %v1844
    %2017 = vst.msk [vmem:[%s8 + $0x58] sm:$0xff] %vm2005, %v1847
    %2018 = vst.msk [vmem:[%s8 + $0x60] sm:$0xff] %vm2005, %v1850
    %2019 = vst.msk [vmem:[%s8 + $0x68] sm:$0xff] %vm2005, %v1853
    %2020 = vst.msk [vmem:[%s8 + $0x70] sm:$0xff] %vm2005, %v1856
    %2021 = vst.msk [vmem:[%s8 + $0x78] sm:$0xff] %vm2005, %v1859
    %2022 = vst.msk [vmem:[%s8 + $0x80] sm:$0xff] %vm2005, %v1862
    %2023 = vst.msk [vmem:[%s8 + $0x88] sm:$0xff] %vm2005, %v1865
    %2024 = vst.msk [vmem:[%s8 + $0x90] sm:$0xff] %vm2005, %v1868
    %2025 = vst.msk [vmem:[%s8 + $0x98] sm:$0xff] %vm2005, %v1871
    %2026 = vst.msk [vmem:[%s8 + $0xa0] sm:$0xff] %vm2005, %v1874
    %2027 = vst.msk [vmem:[%s8 + $0xa8] sm:$0xff] %vm2005, %v1877
    %2028 = vst.msk [vmem:[%s8 + $0xb0] sm:$0xff] %vm2005, %v1880
    %2029 = vst.msk [vmem:[%s8 + $0xb8] sm:$0xff] %vm2005, %v1883
    %2030 = vst.msk [vmem:[%s8 + $0xc0] sm:$0xff] %vm2005, %v1886
    %2031 = vst.msk [vmem:[%s8 + $0xc8] sm:$0xff] %vm2005, %v1889
    %2032 = vst.msk [vmem:[%s8 + $0xd0] sm:$0xff] %vm2005, %v1892
    %2033 = vst.msk [vmem:[%s8 + $0xd8] sm:$0xff] %vm2005, %v1895
    %2034 = vst.msk [vmem:[%s8 + $0xe0] sm:$0xff] %vm2005, %v1898
    %2035 = vst.msk [vmem:[%s8 + $0xe8] sm:$0xff] %vm2005, %v1901
    %2036 = vst.msk [vmem:[%s8 + $0xf0] sm:$0xff] %vm2005, %v1904
    %2037 = vst.msk [vmem:[%s8 + $0xf8] sm:$0xff] %vm2005, %v1907
    %2038 = vst.msk [vmem:[%s8 + $0x100] sm:$0xff] %vm2005, %v1910
    %2039 = vst.msk [vmem:[%s8 + $0x108] sm:$0xff] %vm2005, %v1913
    %2040 = vst.msk [vmem:[%s8 + $0x110] sm:$0xff] %vm2005, %v1916
    %2041 = vst.msk [vmem:[%s8 + $0x118] sm:$0xff] %vm2005, %v1919
    %2042 = vst.msk [vmem:[%s8 + $0x120] sm:$0xff] %vm2005, %v1922
    %2043 = vst.msk [vmem:[%s8 + $0x128] sm:$0xff] %vm2005, %v1925
    %2044 = vst.msk [vmem:[%s8 + $0x130] sm:$0xff] %vm2005, %v1928
    %2045 = vst.msk [vmem:[%s8 + $0x138] sm:$0xff] %vm2005, %v1931
    %2046 = vst.msk [vmem:[%s8 + $0x140] sm:$0xff] %vm2005, %v1934
    %2047 = vst.msk [vmem:[%s8 + $0x148] sm:$0xff] %vm2005, %v1937
    %2048 = vst.msk [vmem:[%s8 + $0x150] sm:$0xff] %vm2005, %v1940
    %2049 = vst.msk [vmem:[%s8 + $0x158] sm:$0xff] %vm2005, %v1943
    %2050 = vst.msk [vmem:[%s8 + $0x160] sm:$0xff] %vm2005, %v1946
    %2051 = vst.msk [vmem:[%s8 + $0x168] sm:$0xff] %vm2005, %v1949
    %2052 = vst.msk [vmem:[%s8 + $0x170] sm:$0xff] %vm2005, %v1952
    %2053 = vst.msk [vmem:[%s8 + $0x178] sm:$0xff] %vm2005, %v1955
    %2054 = vst.msk [vmem:[%s8 + $0x180] sm:$0xff] %vm2005, %v1958
    %2055 = vst.msk [vmem:[%s8 + $0x188] sm:$0xff] %vm2005, %v1961
    %2056 = vst.msk [vmem:[%s8 + $0x190] sm:$0xff] %vm2005, %v1964
    %2057 = vst.msk [vmem:[%s8 + $0x198] sm:$0xff] %vm2005, %v1967
    %2058 = vst.msk [vmem:[%s8 + $0x1a0] sm:$0xff] %vm2005, %v1970
    %2059 = vst.msk [vmem:[%s8 + $0x1a8] sm:$0xff] %vm2005, %v1973
    %2060 = vst.msk [vmem:[%s8 + $0x1b0] sm:$0xff] %vm2005, %v1976
    %2061 = vst.msk [vmem:[%s8 + $0x1b8] sm:$0xff] %vm2005, %v1979
    %2062 = vst.msk [vmem:[%s8 + $0x1c0] sm:$0xff] %vm2005, %v1982
    %2063 = vst.msk [vmem:[%s8 + $0x1c8] sm:$0xff] %vm2005, %v1985
    %2064 = vst.msk [vmem:[%s8 + $0x1d0] sm:$0xff] %vm2005, %v1988
    %2065 = vst.msk [vmem:[%s8 + $0x1d8] sm:$0xff] %vm2005, %v1991
    %2066 = vst.msk [vmem:[%s8 + $0x1e0] sm:$0xff] %vm2005, %v1994
    %2067 = vst.msk [vmem:[%s8 + $0x1e8] sm:$0xff] %vm2005, %v1997
    %2068 = vst.msk [vmem:[%s8 + $0x1f0] sm:$0xff] %vm2005, %v2000
    %2069 = vst.msk [vmem:[%s8 + $0x1f8] sm:$0xff] %vm2005, %v2003
    // Predicated region
    $region38: #{tpu_custom_call.1} parent=1 // pred_check
      _
    $region39: #{tpu_custom_call.1} parent=1 // pred_check_branch
      %2071 = sbr.rel (0) target = $region41
    $region40: #{tpu_custom_call.1} parent=1 // pred_region
      _
    $region41: #{tpu_custom_call.1} parent=1 // pred_fallthru
      _
    // Predicated region
    $region42: #{tpu_custom_call.1} parent=1 // pred_check
      _
    $region43: #{tpu_custom_call.1} parent=1 // pred_check_branch
      %2073 = sbr.rel (0) target = $region45
    $region44: #{tpu_custom_call.1} parent=1 // pred_region
      _
    $region45: #{tpu_custom_call.1} parent=1 // pred_fallthru
      _
    %2074 = vsyncpa [#allocation3], 1

</llo_original>
